<compile_context>
chip_gen: v5e
topology: v5e:2x2
jax: 0.10.0
libtpu: 0.0.40
codegen_flags: <defaults>
</compile_context>

<pallas_src>
import numpy as np

import jax
import jax.numpy as jnp
from jax.experimental import pallas as pl
from jax.experimental.pallas import tpu as pltpu


_B_BLOCK = 128   # images per grid step (multiple of 8; fills v5e MXU rows,
                 # ~15-20 MB live VMEM; >=2 grid steps on real batches so
                 # dimension_semantics=("parallel",) can shard v7x's 2 TCs)


# ----------------------------- fused kernel --------------------------------

def _lenet5_kernel(x_ref,
                   m1_ref, b1_ref, pc1_ref,
                   m2_ref, b2_ref, pc2_ref,
                   m3_ref, b3_ref,
                   w4_ref, b4_ref, w5_ref, b5_ref,
                   o_ref):
    f32 = jnp.float32
    bf16 = jnp.bfloat16
    bsz = x_ref.shape[1]              # batch lives on the sublane (M) dim

    def conv_tanh(act, m_ref, b_ref, oh):
        # act: (H, B, W*Cin) f32 band-layout activations.
        # m_ref: (5*W*Cin, OW*Cout) bf16 row-stacked band weight matrix.
        # One fused MXU matmul per conv layer: stack the 5 shifted row
        # windows along lanes, flatten (OH, B) -> OH*B rows (B % 8 == 0, so
        # the reshape is layout-preserving), dot, bias+tanh in f32.
        slab = jnp.concatenate(
            [act[di:di + oh].astype(bf16) for di in range(5)], axis=-1)
        slab = slab.reshape(oh * bsz, slab.shape[-1])
        acc = jnp.dot(slab, m_ref[...], preferred_element_type=f32)
        y = jnp.tanh(acc + b_ref[...])                  # (OH*B, OW*Cout) f32
        return y.reshape(oh, bsz, -1)

    def avgpool2(a, pc_ref):
        # 2x2 average pool on (H, B, W*C):
        #   rows: VPU pair-average over H (no tiny per-image matmuls),
        #   cols: one flattened (Ho*B, W*C) @ pc matmul over lanes.
        h, _, n = a.shape
        ar = a.reshape(h // 2, 2, bsz, n)
        rows = (ar[:, 0] + ar[:, 1]) * 0.5              # (H/2, B, W*C) f32
        cols = jnp.dot(rows.reshape((h // 2) * bsz, n).astype(bf16),
                       pc_ref[...], preferred_element_type=f32)
        return cols.reshape(h // 2, bsz, -1)            # (H/2, B, W/2*C) f32

    x = x_ref[...]                                      # (32, B, 32) f32
    a1 = conv_tanh(x, m1_ref, b1_ref, 28)               # (28, B, 28*6)
    p1 = avgpool2(a1, pc1_ref)                          # (14, B, 14*6)
    a2 = conv_tanh(p1, m2_ref, b2_ref, 10)              # (10, B, 10*16)
    p2 = avgpool2(a2, pc2_ref)                          # (5,  B, 5*16)
    a3 = conv_tanh(p2, m3_ref, b3_ref, 1)               # (1,  B, 120)
    a3 = a3.reshape(bsz, 120)

    h = jnp.tanh(jnp.dot(a3.astype(bf16), w4_ref[...],
                         preferred_element_type=f32) + b4_ref[...])   # (B, 84)
    logit = (jnp.dot(h.astype(bf16), w5_ref[...],
                     preferred_element_type=f32) + b5_ref[...])       # (B, 128)

    # Softmax in f32 over the 128 padded lanes (pad bias -1e30 -> exactly 0).
    m = jnp.max(logit, axis=-1, keepdims=True)
    e = jnp.exp(logit - m)
    o_ref[...] = e / jnp.sum(e, axis=-1, keepdims=True)


# ----------------------------- weight packing -------------------------------

def _band_weights(w, w_in, dtype):
    """Torch conv weight (Cout, Cin, 5, 5) -> row-stacked (5*W*Cin, OW*Cout).

    row index = di*(W*Cin) + wc*Cin + ci, matching the in-kernel slab layout
    slab[..., di*(W*Cin) + w*Cin + ci] = x[ci, i+di, w], so one matmul
    reproduces nn.Conv2d's VALID cross-correlation.
    """
    w = np.asarray(w, dtype=np.float32)
    cout, cin, k, _ = w.shape
    ow = w_in - k + 1
    band = np.zeros((k, w_in * cin, ow * cout), dtype=np.float32)
    for di in range(k):
        for dj in range(k):
            wt = w[:, :, di, dj].T                      # (Cin, Cout)
            for j in range(ow):
                wc = j + dj
                band[di, wc * cin:(wc + 1) * cin,
                     j * cout:(j + 1) * cout] = wt
    return jnp.asarray(band.reshape(k * w_in * cin, ow * cout), dtype)


def _band_bias(b, ow):
    b = np.asarray(b, dtype=np.float32)
    return jnp.asarray(np.tile(b, ow).reshape(1, ow * b.shape[0]), jnp.float32)


def _pool_col_matrix(w_in, c, dtype):
    """Column/channel 2-pool matrix (W*C, (W/2)*C); row pool is done on VPU."""
    wo = w_in // 2
    pc = np.zeros((w_in * c, wo * c), dtype=np.float32)
    for j in range(wo):
        for dj in range(2):
            for ch in range(c):
                pc[(2 * j + dj) * c + ch, j * c + ch] = 0.5
    return jnp.asarray(pc, dtype)


def pack_params(params, compute_dtype=jnp.bfloat16):
    """One-time repack of torch-layout LeNet-5 weights into kernel operands."""
    w5 = np.zeros((84, 128), dtype=np.float32)
    w5[:, :10] = np.asarray(params["fc2_w"], dtype=np.float32).T
    b5 = np.full((1, 128), -1e30, dtype=np.float32)     # padded lanes -> prob 0
    b5[0, :10] = np.asarray(params["fc2_b"], dtype=np.float32)
    return {
        "m1": _band_weights(params["conv1_w"], 32, compute_dtype),   # (160, 168)
        "b1": _band_bias(params["conv1_b"], 28),                     # (1, 168)
        "pc1": _pool_col_matrix(28, 6, compute_dtype),               # (168, 84)
        "m2": _band_weights(params["conv2_w"], 14, compute_dtype),   # (420, 160)
        "b2": _band_bias(params["conv2_b"], 10),                     # (1, 160)
        "pc2": _pool_col_matrix(10, 16, compute_dtype),              # (160, 80)
        "m3": _band_weights(params["conv3_w"], 5, compute_dtype),    # (400, 120)
        "b3": _band_bias(params["conv3_b"], 1),                      # (1, 120)
        "w4": jnp.asarray(np.asarray(params["fc1_w"], np.float32).T,
                          compute_dtype),                            # (120, 84)
        "b4": jnp.asarray(np.asarray(params["fc1_b"],
                                     np.float32).reshape(1, 84)),    # (1, 84)
        "w5": jnp.asarray(w5, compute_dtype),                        # (84, 128)
        "b5": jnp.asarray(b5),                                       # (1, 128)
    }


_PACKED_ORDER = ("m1", "b1", "pc1", "m2", "b2", "pc2", "m3", "b3",
                 "w4", "b4", "w5", "b5")


def _round_up(x, m):
    return (x + m - 1) // m * m


# ----------------------------- forward pass ---------------------------------

@jax.jit
def lenet5_forward(packed, img):
    """img: (B, 1, 32, 32) float32 NCHW -> softmax probabilities (B, 10)."""
    bsz = img.shape[0]
    b_blk = min(_B_BLOCK, _round_up(bsz, 8))
    b_pad = _round_up(bsz, b_blk)

    x = img.astype(jnp.float32).reshape(bsz, 32, 32)
    if b_pad != bsz:
        x = jnp.pad(x, ((0, b_pad - bsz), (0, 0), (0, 0)))   # pad tail block
    # Put batch on the sublane (matmul-M) dim: (H, B, W) band layout.
    x = jnp.transpose(x, (1, 0, 2))

    operands = [packed[k] for k in _PACKED_ORDER]
    weight_bytes = sum(int(np.prod(o.shape)) * o.dtype.itemsize
                       for o in operands)
    macs_per_img = (28 * 160 * 168 + 14 * 168 * 84 + 10 * 420 * 160
                    + 5 * 160 * 80 + 400 * 120 + 120 * 84 + 84 * 128)
    cost = pl.CostEstimate(
        flops=2 * macs_per_img * b_pad,
        transcendentals=(28 * 168 + 10 * 160 + 120 + 84 + 128) * b_pad,
        bytes_accessed=int(x.size) * 4 + b_pad * 128 * 4 + weight_bytes)

    out = pl.pallas_call(
        _lenet5_kernel,
        out_shape=jax.ShapeDtypeStruct((b_pad, 128), jnp.float32),
        grid=(b_pad // b_blk,),
        in_specs=[pl.BlockSpec((32, b_blk, 32), lambda g: (0, g, 0))]
                 + [pl.BlockSpec(op.shape, lambda g: (0, 0))
                    for op in operands],
        out_specs=pl.BlockSpec((b_blk, 128), lambda g: (g, 0)),
        compiler_params=pltpu.CompilerParams(
            dimension_semantics=("parallel",),
            vmem_limit_bytes=48 * 1024 * 1024),
        cost_estimate=cost,
    )(x, *operands)
    return out[:bsz, :10]


# ----------------------------- pure-JAX reference ---------------------------

def lenet5_reference(params, img):
    hi = jax.lax.Precision.HIGHEST

    def conv_tanh(x, w, b):
        y = jax.lax.conv_general_dilated(
            x, w, window_strides=(1, 1), padding="VALID",
            dimension_numbers=("NCHW", "OIHW", "NCHW"), precision=hi)
        return jnp.tanh(y + b[None, :, None, None])

    def avgpool2(x):
        bb, c, h, w = x.shape
        return x.reshape(bb, c, h // 2, 2, w // 2, 2).mean(axis=(3, 5))

    x = conv_tanh(img, params["conv1_w"], params["conv1_b"])
    x = avgpool2(x)
    x = conv_tanh(x, params["conv2_w"], params["conv2_b"])
    x = avgpool2(x)
    x = conv_tanh(x, params["conv3_w"], params["conv3_b"])
    x = x.reshape(x.shape[0], -1)
    x = jnp.tanh(jnp.dot(x, params["fc1_w"].T, precision=hi) + params["fc1_b"])
    logit = jnp.dot(x, params["fc2_w"].T, precision=hi) + params["fc2_b"]
    return jax.nn.softmax(logit, axis=-1)


# ----------------------------- params & demo --------------------------------

def init_params(key):
    ks = jax.random.split(key, 10)

    def norm(k, shape, scale=0.1):
        return (scale * jax.random.normal(k, shape)).astype(jnp.float32)

    return {
        "conv1_w": norm(ks[0], (6, 1, 5, 5)),
        "conv1_b": norm(ks[1], (6,)),
        "conv2_w": norm(ks[2], (16, 6, 5, 5)),
        "conv2_b": norm(ks[3], (16,)),
        "conv3_w": norm(ks[4], (120, 16, 5, 5)),
        "conv3_b": norm(ks[5], (120,)),
        "fc1_w":   norm(ks[6], (84, 120)),   # torch Linear layout: (out, in)
        "fc1_b":   norm(ks[7], (84,)),
        "fc2_w":   norm(ks[8], (10, 84)),
        "fc2_b":   norm(ks[9], (10,)),
    }


if __name__ == "__main__":
    key = jax.random.PRNGKey(0)
    k_param, k_img = jax.random.split(key)
    params = init_params(k_param)
    # LeNet-5 requires 32x32 inputs so conv3 reduces spatial dims to 1x1.
    img = jax.random.normal(k_img, (2, 1, 32, 32), dtype=jnp.float32)

    packed = pack_params(params)               # one-time weight repack (bf16)
    out = lenet5_forward(packed, img)
    out = jax.block_until_ready(out)

    assert out.shape == (2, 10)
    # Softmax rows sum to 1 (exact f32 division; padded lanes are exactly 0).
    assert bool(jnp.allclose(jnp.sum(out, axis=1), 1.0, atol=1e-4))
    # Match the pure-JAX f32 reference; tolerance covers bf16 MXU operands.
    ref = lenet5_reference(params, img)
    assert bool(jnp.allclose(out, ref, atol=2e-2)), (
        "max|diff|=" + str(float(jnp.max(jnp.abs(out - ref)))))
    print("KERNEL_OK")
</pallas_src>

<mosaic_0001>
module attributes {stable_mosaic.version = 11 : i64} {
  func.func @_lenet5_kernel(%arg0: i32, %arg1: memref<32x8x32xf32, #tpu.memory_space<vmem>>, %arg2: memref<160x168xbf16, #tpu.memory_space<vmem>>, %arg3: memref<1x168xf32, #tpu.memory_space<vmem>>, %arg4: memref<168x84xbf16, #tpu.memory_space<vmem>>, %arg5: memref<420x160xbf16, #tpu.memory_space<vmem>>, %arg6: memref<1x160xf32, #tpu.memory_space<vmem>>, %arg7: memref<160x80xbf16, #tpu.memory_space<vmem>>, %arg8: memref<400x120xbf16, #tpu.memory_space<vmem>>, %arg9: memref<1x120xf32, #tpu.memory_space<vmem>>, %arg10: memref<120x84xbf16, #tpu.memory_space<vmem>>, %arg11: memref<1x84xf32, #tpu.memory_space<vmem>>, %arg12: memref<84x128xbf16, #tpu.memory_space<vmem>>, %arg13: memref<1x128xf32, #tpu.memory_space<vmem>>, %arg14: memref<8x128xf32, #tpu.memory_space<vmem>>) attributes {dimension_semantics = [#tpu.dimension_semantics<parallel>], iteration_bounds = array<i64: 1>, scalar_prefetch = 0 : i64, scratch_operands = 0 : i64, tpu.core_type = #tpu.core_type<tc>, window_params = [{transform_indices = @transform_0, window_bounds = array<i64: 32, 8, 32>}, {pipeline_mode = #tpu.pipeline_mode<synchronous>, transform_indices = @transform_1, window_bounds = array<i64: 160, 168>}, {pipeline_mode = #tpu.pipeline_mode<synchronous>, transform_indices = @transform_2, window_bounds = array<i64: 1, 168>}, {pipeline_mode = #tpu.pipeline_mode<synchronous>, transform_indices = @transform_3, window_bounds = array<i64: 168, 84>}, {pipeline_mode = #tpu.pipeline_mode<synchronous>, transform_indices = @transform_4, window_bounds = array<i64: 420, 160>}, {pipeline_mode = #tpu.pipeline_mode<synchronous>, transform_indices = @transform_5, window_bounds = array<i64: 1, 160>}, {pipeline_mode = #tpu.pipeline_mode<synchronous>, transform_indices = @transform_6, window_bounds = array<i64: 160, 80>}, {pipeline_mode = #tpu.pipeline_mode<synchronous>, transform_indices = @transform_7, window_bounds = array<i64: 400, 120>}, {pipeline_mode = #tpu.pipeline_mode<synchronous>, transform_indices = @transform_8, window_bounds = array<i64: 1, 120>}, {pipeline_mode = #tpu.pipeline_mode<synchronous>, transform_indices = @transform_9, window_bounds = array<i64: 120, 84>}, {pipeline_mode = #tpu.pipeline_mode<synchronous>, transform_indices = @transform_10, window_bounds = array<i64: 1, 84>}, {pipeline_mode = #tpu.pipeline_mode<synchronous>, transform_indices = @transform_11, window_bounds = array<i64: 84, 128>}, {pipeline_mode = #tpu.pipeline_mode<synchronous>, transform_indices = @transform_12, window_bounds = array<i64: 1, 128>}, {transform_indices = @transform_13, window_bounds = array<i64: 8, 128>}]} {
    %c0 = arith.constant 0 : index
    %c0_0 = arith.constant 0 : index
    %c0_1 = arith.constant 0 : index
    %0 = vector.load %arg1[%c0, %c0_0, %c0_1] : memref<32x8x32xf32, #tpu.memory_space<vmem>>, vector<32x8x32xf32>
    %1 = vector.extract_strided_slice %0 {offsets = [0, 0, 0], sizes = [28, 8, 32], strides = [1, 1, 1]} : vector<32x8x32xf32> to vector<28x8x32xf32>
    %2 = arith.truncf %1 : vector<28x8x32xf32> to vector<28x8x32xbf16>
    %3 = vector.extract_strided_slice %0 {offsets = [1, 0, 0], sizes = [28, 8, 32], strides = [1, 1, 1]} : vector<32x8x32xf32> to vector<28x8x32xf32>
    %4 = arith.truncf %3 : vector<28x8x32xf32> to vector<28x8x32xbf16>
    %5 = vector.extract_strided_slice %0 {offsets = [2, 0, 0], sizes = [28, 8, 32], strides = [1, 1, 1]} : vector<32x8x32xf32> to vector<28x8x32xf32>
    %6 = arith.truncf %5 : vector<28x8x32xf32> to vector<28x8x32xbf16>
    %7 = vector.extract_strided_slice %0 {offsets = [3, 0, 0], sizes = [28, 8, 32], strides = [1, 1, 1]} : vector<32x8x32xf32> to vector<28x8x32xf32>
    %8 = arith.truncf %7 : vector<28x8x32xf32> to vector<28x8x32xbf16>
    %9 = vector.extract_strided_slice %0 {offsets = [4, 0, 0], sizes = [28, 8, 32], strides = [1, 1, 1]} : vector<32x8x32xf32> to vector<28x8x32xf32>
    %10 = arith.truncf %9 : vector<28x8x32xf32> to vector<28x8x32xbf16>
    %11 = tpu.concatenate %2, %4, %6, %8, %10 in 2 : vector<28x8x32xbf16>, vector<28x8x32xbf16>, vector<28x8x32xbf16>, vector<28x8x32xbf16>, vector<28x8x32xbf16> -> vector<28x8x160xbf16>
    %12 = vector.shape_cast %11 : vector<28x8x160xbf16> to vector<224x160xbf16>
    %c0_2 = arith.constant 0 : index
    %c0_3 = arith.constant 0 : index
    %13 = vector.load %arg2[%c0_2, %c0_3] : memref<160x168xbf16, #tpu.memory_space<vmem>>, vector<160x168xbf16>
    %cst = arith.constant dense<0.000000e+00> : vector<224x168xf32>
    %14 = tpu.matmul %12, %13, %cst {dimension_numbers = #tpu.dot_dimension_numbers<[1], [0], [0], [1], [0, 0, 1, 1], [], []>} : vector<224x160xbf16>, vector<160x168xbf16>, vector<224x168xf32> -> vector<224x168xf32>
    %c0_4 = arith.constant 0 : index
    %c0_5 = arith.constant 0 : index
    %15 = vector.load %arg3[%c0_4, %c0_5] : memref<1x168xf32, #tpu.memory_space<vmem>>, vector<1x168xf32>
    %16 = vector.broadcast %15 : vector<1x168xf32> to vector<224x168xf32>
    %17 = arith.addf %14, %16 : vector<224x168xf32>
    %18 = math.tanh %17 : vector<224x168xf32>
    %19 = vector.shape_cast %18 : vector<224x168xf32> to vector<28x8x168xf32>
    %20 = vector.shape_cast %19 : vector<28x8x168xf32> to vector<14x2x8x168xf32>
    %21 = vector.extract_strided_slice %20 {offsets = [0, 0, 0, 0], sizes = [14, 1, 8, 168], strides = [1, 1, 1, 1]} : vector<14x2x8x168xf32> to vector<14x1x8x168xf32>
    %22 = vector.shape_cast %21 : vector<14x1x8x168xf32> to vector<14x8x168xf32>
    %23 = vector.extract_strided_slice %20 {offsets = [0, 1, 0, 0], sizes = [14, 1, 8, 168], strides = [1, 1, 1, 1]} : vector<14x2x8x168xf32> to vector<14x1x8x168xf32>
    %24 = vector.shape_cast %23 : vector<14x1x8x168xf32> to vector<14x8x168xf32>
    %25 = arith.addf %22, %24 : vector<14x8x168xf32>
    %cst_6 = arith.constant 5.000000e-01 : f32
    %26 = vector.broadcast %cst_6 : f32 to vector<14x8x168xf32>
    %27 = arith.mulf %25, %26 : vector<14x8x168xf32>
    %28 = vector.shape_cast %27 : vector<14x8x168xf32> to vector<112x168xf32>
    %29 = arith.truncf %28 : vector<112x168xf32> to vector<112x168xbf16>
    %c0_7 = arith.constant 0 : index
    %c0_8 = arith.constant 0 : index
    %30 = vector.load %arg4[%c0_7, %c0_8] : memref<168x84xbf16, #tpu.memory_space<vmem>>, vector<168x84xbf16>
    %cst_9 = arith.constant dense<0.000000e+00> : vector<112x84xf32>
    %31 = tpu.matmul %29, %30, %cst_9 {dimension_numbers = #tpu.dot_dimension_numbers<[1], [0], [0], [1], [0, 0, 1, 1], [], []>} : vector<112x168xbf16>, vector<168x84xbf16>, vector<112x84xf32> -> vector<112x84xf32>
    %32 = vector.shape_cast %31 : vector<112x84xf32> to vector<14x8x84xf32>
    %33 = vector.extract_strided_slice %32 {offsets = [0, 0, 0], sizes = [10, 8, 84], strides = [1, 1, 1]} : vector<14x8x84xf32> to vector<10x8x84xf32>
    %34 = arith.truncf %33 : vector<10x8x84xf32> to vector<10x8x84xbf16>
    %35 = vector.extract_strided_slice %32 {offsets = [1, 0, 0], sizes = [10, 8, 84], strides = [1, 1, 1]} : vector<14x8x84xf32> to vector<10x8x84xf32>
    %36 = arith.truncf %35 : vector<10x8x84xf32> to vector<10x8x84xbf16>
    %37 = vector.extract_strided_slice %32 {offsets = [2, 0, 0], sizes = [10, 8, 84], strides = [1, 1, 1]} : vector<14x8x84xf32> to vector<10x8x84xf32>
    %38 = arith.truncf %37 : vector<10x8x84xf32> to vector<10x8x84xbf16>
    %39 = vector.extract_strided_slice %32 {offsets = [3, 0, 0], sizes = [10, 8, 84], strides = [1, 1, 1]} : vector<14x8x84xf32> to vector<10x8x84xf32>
    %40 = arith.truncf %39 : vector<10x8x84xf32> to vector<10x8x84xbf16>
    %41 = vector.extract_strided_slice %32 {offsets = [4, 0, 0], sizes = [10, 8, 84], strides = [1, 1, 1]} : vector<14x8x84xf32> to vector<10x8x84xf32>
    %42 = arith.truncf %41 : vector<10x8x84xf32> to vector<10x8x84xbf16>
    %43 = tpu.concatenate %34, %36, %38, %40, %42 in 2 : vector<10x8x84xbf16>, vector<10x8x84xbf16>, vector<10x8x84xbf16>, vector<10x8x84xbf16>, vector<10x8x84xbf16> -> vector<10x8x420xbf16>
    %44 = vector.shape_cast %43 : vector<10x8x420xbf16> to vector<80x420xbf16>
    %c0_10 = arith.constant 0 : index
    %c0_11 = arith.constant 0 : index
    %45 = vector.load %arg5[%c0_10, %c0_11] : memref<420x160xbf16, #tpu.memory_space<vmem>>, vector<420x160xbf16>
    %cst_12 = arith.constant dense<0.000000e+00> : vector<80x160xf32>
    %46 = tpu.matmul %44, %45, %cst_12 {dimension_numbers = #tpu.dot_dimension_numbers<[1], [0], [0], [1], [0, 0, 1, 1], [], []>} : vector<80x420xbf16>, vector<420x160xbf16>, vector<80x160xf32> -> vector<80x160xf32>
    %c0_13 = arith.constant 0 : index
    %c0_14 = arith.constant 0 : index
    %47 = vector.load %arg6[%c0_13, %c0_14] : memref<1x160xf32, #tpu.memory_space<vmem>>, vector<1x160xf32>
    %48 = vector.broadcast %47 : vector<1x160xf32> to vector<80x160xf32>
    %49 = arith.addf %46, %48 : vector<80x160xf32>
    %50 = math.tanh %49 : vector<80x160xf32>
    %51 = vector.shape_cast %50 : vector<80x160xf32> to vector<10x8x160xf32>
    %52 = vector.shape_cast %51 : vector<10x8x160xf32> to vector<5x2x8x160xf32>
    %53 = vector.extract_strided_slice %52 {offsets = [0, 0, 0, 0], sizes = [5, 1, 8, 160], strides = [1, 1, 1, 1]} : vector<5x2x8x160xf32> to vector<5x1x8x160xf32>
    %54 = vector.shape_cast %53 : vector<5x1x8x160xf32> to vector<5x8x160xf32>
    %55 = vector.extract_strided_slice %52 {offsets = [0, 1, 0, 0], sizes = [5, 1, 8, 160], strides = [1, 1, 1, 1]} : vector<5x2x8x160xf32> to vector<5x1x8x160xf32>
    %56 = vector.shape_cast %55 : vector<5x1x8x160xf32> to vector<5x8x160xf32>
    %57 = arith.addf %54, %56 : vector<5x8x160xf32>
    %cst_15 = arith.constant 5.000000e-01 : f32
    %58 = vector.broadcast %cst_15 : f32 to vector<5x8x160xf32>
    %59 = arith.mulf %57, %58 : vector<5x8x160xf32>
    %60 = vector.shape_cast %59 : vector<5x8x160xf32> to vector<40x160xf32>
    %61 = arith.truncf %60 : vector<40x160xf32> to vector<40x160xbf16>
    %c0_16 = arith.constant 0 : index
    %c0_17 = arith.constant 0 : index
    %62 = vector.load %arg7[%c0_16, %c0_17] : memref<160x80xbf16, #tpu.memory_space<vmem>>, vector<160x80xbf16>
    %cst_18 = arith.constant dense<0.000000e+00> : vector<40x80xf32>
    %63 = tpu.matmul %61, %62, %cst_18 {dimension_numbers = #tpu.dot_dimension_numbers<[1], [0], [0], [1], [0, 0, 1, 1], [], []>} : vector<40x160xbf16>, vector<160x80xbf16>, vector<40x80xf32> -> vector<40x80xf32>
    %64 = vector.shape_cast %63 : vector<40x80xf32> to vector<5x8x80xf32>
    %65 = vector.extract_strided_slice %64 {offsets = [0, 0, 0], sizes = [1, 8, 80], strides = [1, 1, 1]} : vector<5x8x80xf32> to vector<1x8x80xf32>
    %66 = arith.truncf %65 : vector<1x8x80xf32> to vector<1x8x80xbf16>
    %67 = vector.extract_strided_slice %64 {offsets = [1, 0, 0], sizes = [1, 8, 80], strides = [1, 1, 1]} : vector<5x8x80xf32> to vector<1x8x80xf32>
    %68 = arith.truncf %67 : vector<1x8x80xf32> to vector<1x8x80xbf16>
    %69 = vector.extract_strided_slice %64 {offsets = [2, 0, 0], sizes = [1, 8, 80], strides = [1, 1, 1]} : vector<5x8x80xf32> to vector<1x8x80xf32>
    %70 = arith.truncf %69 : vector<1x8x80xf32> to vector<1x8x80xbf16>
    %71 = vector.extract_strided_slice %64 {offsets = [3, 0, 0], sizes = [1, 8, 80], strides = [1, 1, 1]} : vector<5x8x80xf32> to vector<1x8x80xf32>
    %72 = arith.truncf %71 : vector<1x8x80xf32> to vector<1x8x80xbf16>
    %73 = vector.extract_strided_slice %64 {offsets = [4, 0, 0], sizes = [1, 8, 80], strides = [1, 1, 1]} : vector<5x8x80xf32> to vector<1x8x80xf32>
    %74 = arith.truncf %73 : vector<1x8x80xf32> to vector<1x8x80xbf16>
    %75 = tpu.concatenate %66, %68, %70, %72, %74 in 2 : vector<1x8x80xbf16>, vector<1x8x80xbf16>, vector<1x8x80xbf16>, vector<1x8x80xbf16>, vector<1x8x80xbf16> -> vector<1x8x400xbf16>
    %76 = vector.shape_cast %75 : vector<1x8x400xbf16> to vector<8x400xbf16>
    %c0_19 = arith.constant 0 : index
    %c0_20 = arith.constant 0 : index
    %77 = vector.load %arg8[%c0_19, %c0_20] : memref<400x120xbf16, #tpu.memory_space<vmem>>, vector<400x120xbf16>
    %cst_21 = arith.constant dense<0.000000e+00> : vector<8x120xf32>
    %78 = tpu.matmul %76, %77, %cst_21 {dimension_numbers = #tpu.dot_dimension_numbers<[1], [0], [0], [1], [0, 0, 1, 1], [], []>} : vector<8x400xbf16>, vector<400x120xbf16>, vector<8x120xf32> -> vector<8x120xf32>
    %c0_22 = arith.constant 0 : index
    %c0_23 = arith.constant 0 : index
    %79 = vector.load %arg9[%c0_22, %c0_23] : memref<1x120xf32, #tpu.memory_space<vmem>>, vector<1x120xf32>
    %80 = vector.broadcast %79 : vector<1x120xf32> to vector<8x120xf32>
    %81 = arith.addf %78, %80 : vector<8x120xf32>
    %82 = math.tanh %81 : vector<8x120xf32>
    %83 = vector.shape_cast %82 : vector<8x120xf32> to vector<1x8x120xf32>
    %84 = vector.shape_cast %83 : vector<1x8x120xf32> to vector<8x120xf32>
    %85 = arith.truncf %84 : vector<8x120xf32> to vector<8x120xbf16>
    %c0_24 = arith.constant 0 : index
    %c0_25 = arith.constant 0 : index
    %86 = vector.load %arg10[%c0_24, %c0_25] : memref<120x84xbf16, #tpu.memory_space<vmem>>, vector<120x84xbf16>
    %cst_26 = arith.constant dense<0.000000e+00> : vector<8x84xf32>
    %87 = tpu.matmul %85, %86, %cst_26 {dimension_numbers = #tpu.dot_dimension_numbers<[1], [0], [0], [1], [0, 0, 1, 1], [], []>} : vector<8x120xbf16>, vector<120x84xbf16>, vector<8x84xf32> -> vector<8x84xf32>
    %c0_27 = arith.constant 0 : index
    %c0_28 = arith.constant 0 : index
    %88 = vector.load %arg11[%c0_27, %c0_28] : memref<1x84xf32, #tpu.memory_space<vmem>>, vector<1x84xf32>
    %89 = vector.broadcast %88 : vector<1x84xf32> to vector<8x84xf32>
    %90 = arith.addf %87, %89 : vector<8x84xf32>
    %91 = math.tanh %90 : vector<8x84xf32>
    %92 = arith.truncf %91 : vector<8x84xf32> to vector<8x84xbf16>
    %c0_29 = arith.constant 0 : index
    %c0_30 = arith.constant 0 : index
    %93 = vector.load %arg12[%c0_29, %c0_30] : memref<84x128xbf16, #tpu.memory_space<vmem>>, vector<84x128xbf16>
    %cst_31 = arith.constant dense<0.000000e+00> : vector<8x128xf32>
    %94 = tpu.matmul %92, %93, %cst_31 {dimension_numbers = #tpu.dot_dimension_numbers<[1], [0], [0], [1], [0, 0, 1, 1], [], []>} : vector<8x84xbf16>, vector<84x128xbf16>, vector<8x128xf32> -> vector<8x128xf32>
    %c0_32 = arith.constant 0 : index
    %c0_33 = arith.constant 0 : index
    %95 = vector.load %arg13[%c0_32, %c0_33] : memref<1x128xf32, #tpu.memory_space<vmem>>, vector<1x128xf32>
    %96 = vector.broadcast %95 : vector<1x128xf32> to vector<8x128xf32>
    %97 = arith.addf %94, %96 : vector<8x128xf32>
    %cst_34 = arith.constant dense<0xFF800000> : vector<8xf32>
    %98 = vector.multi_reduction <maximumf>, %97, %cst_34 [1] : vector<8x128xf32> to vector<8xf32>
    %99 = vector.shape_cast %98 : vector<8xf32> to vector<8x1xf32>
    %100 = vector.broadcast %99 : vector<8x1xf32> to vector<8x128xf32>
    %101 = arith.subf %97, %100 : vector<8x128xf32>
    %102 = math.exp %101 : vector<8x128xf32>
    %cst_35 = arith.constant dense<0.000000e+00> : vector<8xf32>
    %103 = vector.multi_reduction <add>, %102, %cst_35 [1] : vector<8x128xf32> to vector<8xf32>
    %104 = vector.shape_cast %103 : vector<8xf32> to vector<8x1xf32>
    %105 = vector.broadcast %104 : vector<8x1xf32> to vector<8x128xf32>
    %106 = arith.divf %102, %105 : vector<8x128xf32>
    %c0_36 = arith.constant 0 : index
    %c0_37 = arith.constant 0 : index
    %107 = vector.load %arg14[%c0_36, %c0_37] : memref<8x128xf32, #tpu.memory_space<vmem>>, vector<8x128xf32>
    tpu.vector_store %arg14[%c0_36, %c0_37], %106 {strides = array<i32>} : memref<8x128xf32, #tpu.memory_space<vmem>>, vector<8x128xf32>,
    return
  }
  func.func @transform_0(%arg0: i32) -> (i32, i32, i32) {
    %c0_i32 = arith.constant 0 : i32
    %c0_i32_0 = arith.constant 0 : i32
    %c0_i32_1 = arith.constant 0 : i32
    return %c0_i32, %arg0, %c0_i32_0 : i32, i32, i32
  }
  func.func @transform_1(%arg0: i32) -> (i32, i32) {
    %c0_i32 = arith.constant 0 : i32
    %c0_i32_0 = arith.constant 0 : i32
    %c0_i32_1 = arith.constant 0 : i32
    return %c0_i32, %c0_i32_0 : i32, i32
  }
  func.func @transform_2(%arg0: i32) -> (i32, i32) {
    %c0_i32 = arith.constant 0 : i32
    %c0_i32_0 = arith.constant 0 : i32
    %c0_i32_1 = arith.constant 0 : i32
    return %c0_i32, %c0_i32_0 : i32, i32
  }
  func.func @transform_3(%arg0: i32) -> (i32, i32) {
    %c0_i32 = arith.constant 0 : i32
    %c0_i32_0 = arith.constant 0 : i32
    %c0_i32_1 = arith.constant 0 : i32
    return %c0_i32, %c0_i32_0 : i32, i32
  }
  func.func @transform_4(%arg0: i32) -> (i32, i32) {
    %c0_i32 = arith.constant 0 : i32
    %c0_i32_0 = arith.constant 0 : i32
    %c0_i32_1 = arith.constant 0 : i32
    return %c0_i32, %c0_i32_0 : i32, i32
  }
  func.func @transform_5(%arg0: i32) -> (i32, i32) {
    %c0_i32 = arith.constant 0 : i32
    %c0_i32_0 = arith.constant 0 : i32
    %c0_i32_1 = arith.constant 0 : i32
    return %c0_i32, %c0_i32_0 : i32, i32
  }
  func.func @transform_6(%arg0: i32) -> (i32, i32) {
    %c0_i32 = arith.constant 0 : i32
    %c0_i32_0 = arith.constant 0 : i32
    %c0_i32_1 = arith.constant 0 : i32
    return %c0_i32, %c0_i32_0 : i32, i32
  }
  func.func @transform_7(%arg0: i32) -> (i32, i32) {
    %c0_i32 = arith.constant 0 : i32
    %c0_i32_0 = arith.constant 0 : i32
    %c0_i32_1 = arith.constant 0 : i32
    return %c0_i32, %c0_i32_0 : i32, i32
  }
  func.func @transform_8(%arg0: i32) -> (i32, i32) {
    %c0_i32 = arith.constant 0 : i32
    %c0_i32_0 = arith.constant 0 : i32
    %c0_i32_1 = arith.constant 0 : i32
    return %c0_i32, %c0_i32_0 : i32, i32
  }
  func.func @transform_9(%arg0: i32) -> (i32, i32) {
    %c0_i32 = arith.constant 0 : i32
    %c0_i32_0 = arith.constant 0 : i32
    %c0_i32_1 = arith.constant 0 : i32
    return %c0_i32, %c0_i32_0 : i32, i32
  }
  func.func @transform_10(%arg0: i32) -> (i32, i32) {
    %c0_i32 = arith.constant 0 : i32
    %c0_i32_0 = arith.constant 0 : i32
    %c0_i32_1 = arith.constant 0 : i32
    return %c0_i32, %c0_i32_0 : i32, i32
  }
  func.func @transform_11(%arg0: i32) -> (i32, i32) {
    %c0_i32 = arith.constant 0 : i32
    %c0_i32_0 = arith.constant 0 : i32
    %c0_i32_1 = arith.constant 0 : i32
    return %c0_i32, %c0_i32_0 : i32, i32
  }
  func.func @transform_12(%arg0: i32) -> (i32, i32) {
    %c0_i32 = arith.constant 0 : i32
    %c0_i32_0 = arith.constant 0 : i32
    %c0_i32_1 = arith.constant 0 : i32
    return %c0_i32, %c0_i32_0 : i32, i32
  }
  func.func @transform_13(%arg0: i32) -> (i32, i32) {
    %c0_i32 = arith.constant 0 : i32
    %c0_i32_0 = arith.constant 0 : i32
    return %arg0, %c0_i32 : i32, i32
  }
}

</mosaic_0001>

<llo_original>
// kernel: lenet5_forward.1
$region0: #{lenet5_forward.1}
  #allocation0 [shape = 'u32[]', space=smem, size = 0x4, offset = 0x4, fixed_abs, tag = 'smem constant byte address 0x4 - core index']
  #allocation1 [shape = 'u32[72,128]{1,0:T(1,128)}', space=vmem, size = 0x9000, scoped, tag = 'internal scratch']
  %s0 = inlined_call_operand.vmem [shape: f32[32,8,32], index: 0, kind: input, shape index: {}]
  %s1 = inlined_call_operand.vmem [shape: bf16[160,168], index: 1, kind: input, shape index: {}]
  %s2 = inlined_call_operand.vmem [shape: f32[1,168], index: 2, kind: input, shape index: {}]
  %s3 = inlined_call_operand.vmem [shape: bf16[168,84], index: 3, kind: input, shape index: {}]
  %s4 = inlined_call_operand.vmem [shape: bf16[420,160], index: 4, kind: input, shape index: {}]
  %s5 = inlined_call_operand.vmem [shape: f32[1,160], index: 5, kind: input, shape index: {}]
  %s6 = inlined_call_operand.vmem [shape: bf16[160,80], index: 6, kind: input, shape index: {}]
  %s7 = inlined_call_operand.vmem [shape: bf16[400,120], index: 7, kind: input, shape index: {}]
  %s8 = inlined_call_operand.vmem [shape: f32[1,120], index: 8, kind: input, shape index: {}]
  %s9 = inlined_call_operand.vmem [shape: bf16[120,84], index: 9, kind: input, shape index: {}]
  %s10 = inlined_call_operand.vmem [shape: f32[1,84], index: 10, kind: input, shape index: {}]
  %s11 = inlined_call_operand.vmem [shape: bf16[84,128], index: 11, kind: input, shape index: {}]
  %s12 = inlined_call_operand.vmem [shape: f32[1,128], index: 12, kind: input, shape index: {}]
  %s13 = inlined_call_operand.vmem [shape: f32[8,128], index: 13, kind: output, shape index: {}]
  %s14 = sld [smem:[#allocation0]]
  $region62: #{lenet5_forward.1} parent=0
    _
  %s16 = ssub.s32 1, %s14
  %s17 = scalar_select 0, %s16, %s14
  // Predicated region
  $region2: #{lenet5_forward.1} parent=0 // pred_check
    _
  $region3: #{lenet5_forward.1} parent=0 // pred_check_branch
    %19 = sbr.rel (0) target = $region5
  $region4: #{lenet5_forward.1} parent=0 // pred_region
    _
  $region5: #{lenet5_forward.1} parent=0 // pred_fallthru
    _
  // Predicated region
  $region6: #{lenet5_forward.1} parent=0 // pred_check
    _
  $region7: #{lenet5_forward.1} parent=0 // pred_check_branch
    %21 = sbr.rel (0) target = $region9
  $region8: #{lenet5_forward.1} parent=0 // pred_region
    _
  $region9: #{lenet5_forward.1} parent=0 // pred_fallthru
    _
  // Predicated region
  $region10: #{lenet5_forward.1} parent=0 // pred_check
    _
  $region11: #{lenet5_forward.1} parent=0 // pred_check_branch
    %23 = sbr.rel (0) target = $region13
  $region12: #{lenet5_forward.1} parent=0 // pred_region
    _
  $region13: #{lenet5_forward.1} parent=0 // pred_fallthru
    _
  // Predicated region
  $region14: #{lenet5_forward.1} parent=0 // pred_check
    _
  $region15: #{lenet5_forward.1} parent=0 // pred_check_branch
    %25 = sbr.rel (0) target = $region17
  $region16: #{lenet5_forward.1} parent=0 // pred_region
    _
  $region17: #{lenet5_forward.1} parent=0 // pred_fallthru
    _
  // Predicated region
  $region18: #{lenet5_forward.1} parent=0 // pred_check
    _
  $region19: #{lenet5_forward.1} parent=0 // pred_check_branch
    %27 = sbr.rel (0) target = $region21
  $region20: #{lenet5_forward.1} parent=0 // pred_region
    _
  $region21: #{lenet5_forward.1} parent=0 // pred_fallthru
    _
  // Predicated region
  $region22: #{lenet5_forward.1} parent=0 // pred_check
    _
  $region23: #{lenet5_forward.1} parent=0 // pred_check_branch
    %29 = sbr.rel (0) target = $region25
  $region24: #{lenet5_forward.1} parent=0 // pred_region
    _
  $region25: #{lenet5_forward.1} parent=0 // pred_fallthru
    _
  // Predicated region
  $region26: #{lenet5_forward.1} parent=0 // pred_check
    _
  $region27: #{lenet5_forward.1} parent=0 // pred_check_branch
    %31 = sbr.rel (0) target = $region29
  $region28: #{lenet5_forward.1} parent=0 // pred_region
    _
  $region29: #{lenet5_forward.1} parent=0 // pred_fallthru
    _
  // Predicated region
  $region30: #{lenet5_forward.1} parent=0 // pred_check
    _
  $region31: #{lenet5_forward.1} parent=0 // pred_check_branch
    %33 = sbr.rel (0) target = $region33
  $region32: #{lenet5_forward.1} parent=0 // pred_region
    _
  $region33: #{lenet5_forward.1} parent=0 // pred_fallthru
    _
  // Predicated region
  $region34: #{lenet5_forward.1} parent=0 // pred_check
    _
  $region35: #{lenet5_forward.1} parent=0 // pred_check_branch
    %35 = sbr.rel (0) target = $region37
  $region36: #{lenet5_forward.1} parent=0 // pred_region
    _
  $region37: #{lenet5_forward.1} parent=0 // pred_fallthru
    _
  // Predicated region
  $region38: #{lenet5_forward.1} parent=0 // pred_check
    _
  $region39: #{lenet5_forward.1} parent=0 // pred_check_branch
    %37 = sbr.rel (0) target = $region41
  $region40: #{lenet5_forward.1} parent=0 // pred_region
    _
  $region41: #{lenet5_forward.1} parent=0 // pred_fallthru
    _
  // Predicated region
  $region42: #{lenet5_forward.1} parent=0 // pred_check
    _
  $region43: #{lenet5_forward.1} parent=0 // pred_check_branch
    %39 = sbr.rel (0) target = $region45
  $region44: #{lenet5_forward.1} parent=0 // pred_region
    _
  $region45: #{lenet5_forward.1} parent=0 // pred_fallthru
    _
  // Predicated region
  $region46: #{lenet5_forward.1} parent=0 // pred_check
    _
  $region47: #{lenet5_forward.1} parent=0 // pred_check_branch
    %41 = sbr.rel (0) target = $region49
  $region48: #{lenet5_forward.1} parent=0 // pred_region
    _
  $region49: #{lenet5_forward.1} parent=0 // pred_fallthru
    _
  // Predicated region
  $region50: #{lenet5_forward.1} parent=0 // pred_check
    _
  $region51: #{lenet5_forward.1} parent=0 // pred_check_branch
    %43 = sbr.rel (0) target = $region53
  $region52: #{lenet5_forward.1} parent=0 // pred_region
    _
  $region53: #{lenet5_forward.1} parent=0 // pred_fallthru
    _
  %v45 = vld [vmem:[%s0] sm:$0xff]
  %v46 = vld [vmem:[%s0 + $0x8] sm:$0xff]
  %v47 = vld [vmem:[%s0 + $0x10] sm:$0xff]
  %v48 = vld [vmem:[%s0 + $0x18] sm:$0xff]
  %v49 = vld [vmem:[%s0 + $0x20] sm:$0xff]
  %v50 = vld [vmem:[%s0 + $0x28] sm:$0xff]
  %v51 = vld [vmem:[%s0 + $0x30] sm:$0xff]
  %v52 = vld [vmem:[%s0 + $0x38] sm:$0xff]
  %v53 = vld [vmem:[%s0 + $0x40] sm:$0xff]
  %v54 = vld [vmem:[%s0 + $0x48] sm:$0xff]
  %v55 = vld [vmem:[%s0 + $0x50] sm:$0xff]
  %v56 = vld [vmem:[%s0 + $0x58] sm:$0xff]
  %v57 = vld [vmem:[%s0 + $0x60] sm:$0xff]
  %v58 = vld [vmem:[%s0 + $0x68] sm:$0xff]
  %v59 = vld [vmem:[%s0 + $0x70] sm:$0xff]
  %v60 = vld [vmem:[%s0 + $0x78] sm:$0xff]
  %v61 = vld [vmem:[%s0 + $0x80] sm:$0xff]
  %v62 = vld [vmem:[%s0 + $0x88] sm:$0xff]
  %v63 = vld [vmem:[%s0 + $0x90] sm:$0xff]
  %v64 = vld [vmem:[%s0 + $0x98] sm:$0xff]
  %v65 = vld [vmem:[%s0 + $0xa0] sm:$0xff]
  %v66 = vld [vmem:[%s0 + $0xa8] sm:$0xff]
  %v67 = vld [vmem:[%s0 + $0xb0] sm:$0xff]
  %v68 = vld [vmem:[%s0 + $0xb8] sm:$0xff]
  %v69 = vld [vmem:[%s0 + $0xc0] sm:$0xff]
  %v70 = vld [vmem:[%s0 + $0xc8] sm:$0xff]
  %v71 = vld [vmem:[%s0 + $0xd0] sm:$0xff]
  %v72 = vld [vmem:[%s0 + $0xd8] sm:$0xff]
  %v73 = vld [vmem:[%s0 + $0xe0] sm:$0xff]
  %v74 = vld [vmem:[%s0 + $0xe8] sm:$0xff]
  %v75 = vld [vmem:[%s0 + $0xf0] sm:$0xff]
  %v76 = vld [vmem:[%s0 + $0xf8] sm:$0xff]
  %v77 = vpack.c.bf16 %v45, %v45
  %v78 = vpack.c.bf16 %v46, %v46
  %v79 = vpack.c.bf16 %v47, %v47
  %v80 = vpack.c.bf16 %v48, %v48
  %v81 = vpack.c.bf16 %v49, %v49
  %v82 = vpack.c.bf16 %v50, %v50
  %v83 = vpack.c.bf16 %v51, %v51
  %v84 = vpack.c.bf16 %v52, %v52
  %v85 = vpack.c.bf16 %v53, %v53
  %v86 = vpack.c.bf16 %v54, %v54
  %v87 = vpack.c.bf16 %v55, %v55
  %v88 = vpack.c.bf16 %v56, %v56
  %v89 = vpack.c.bf16 %v57, %v57
  %v90 = vpack.c.bf16 %v58, %v58
  %v91 = vpack.c.bf16 %v59, %v59
  %v92 = vpack.c.bf16 %v60, %v60
  %v93 = vpack.c.bf16 %v61, %v61
  %v94 = vpack.c.bf16 %v62, %v62
  %v95 = vpack.c.bf16 %v63, %v63
  %v96 = vpack.c.bf16 %v64, %v64
  %v97 = vpack.c.bf16 %v65, %v65
  %v98 = vpack.c.bf16 %v66, %v66
  %v99 = vpack.c.bf16 %v67, %v67
  %v100 = vpack.c.bf16 %v68, %v68
  %v101 = vpack.c.bf16 %v69, %v69
  %v102 = vpack.c.bf16 %v70, %v70
  %v103 = vpack.c.bf16 %v71, %v71
  %v104 = vpack.c.bf16 %v72, %v72
  %v105 = vpack.c.bf16 %v73, %v73
  %v106 = vpack.c.bf16 %v74, %v74
  %v107 = vpack.c.bf16 %v75, %v75
  %v108 = vpack.c.bf16 %v76, %v76
  %v137 = vunpack.c.l.b16 %v78
  %v138 = vunpack.c.l.b16 %v79
  %v139 = vunpack.c.l.b16 %v80
  %v140 = vunpack.c.l.b16 %v81
  %v141 = vunpack.c.l.b16 %v82
  %v142 = vunpack.c.l.b16 %v83
  %v143 = vunpack.c.l.b16 %v84
  %v144 = vunpack.c.l.b16 %v85
  %v145 = vunpack.c.l.b16 %v86
  %v146 = vunpack.c.l.b16 %v87
  %v147 = vunpack.c.l.b16 %v88
  %v148 = vunpack.c.l.b16 %v89
  %v149 = vunpack.c.l.b16 %v90
  %v150 = vunpack.c.l.b16 %v91
  %v151 = vunpack.c.l.b16 %v92
  %v152 = vunpack.c.l.b16 %v93
  %v153 = vunpack.c.l.b16 %v94
  %v154 = vunpack.c.l.b16 %v95
  %v155 = vunpack.c.l.b16 %v96
  %v156 = vunpack.c.l.b16 %v97
  %v157 = vunpack.c.l.b16 %v98
  %v158 = vunpack.c.l.b16 %v99
  %v159 = vunpack.c.l.b16 %v100
  %v160 = vunpack.c.l.b16 %v101
  %v161 = vunpack.c.l.b16 %v102
  %v162 = vunpack.c.l.b16 %v103
  %v163 = vunpack.c.l.b16 %v104
  %v164 = vunpack.c.l.b16 %v105
  %v165 = vpack.c.b16 %v137, %v137
  %v166 = vpack.c.b16 %v138, %v138
  %v167 = vpack.c.b16 %v139, %v139
  %v168 = vpack.c.b16 %v140, %v140
  %v169 = vpack.c.b16 %v141, %v141
  %v170 = vpack.c.b16 %v142, %v142
  %v171 = vpack.c.b16 %v143, %v143
  %v172 = vpack.c.b16 %v144, %v144
  %v173 = vpack.c.b16 %v145, %v145
  %v174 = vpack.c.b16 %v146, %v146
  %v175 = vpack.c.b16 %v147, %v147
  %v176 = vpack.c.b16 %v148, %v148
  %v177 = vpack.c.b16 %v149, %v149
  %v178 = vpack.c.b16 %v150, %v150
  %v179 = vpack.c.b16 %v151, %v151
  %v180 = vpack.c.b16 %v152, %v152
  %v181 = vpack.c.b16 %v153, %v153
  %v182 = vpack.c.b16 %v154, %v154
  %v183 = vpack.c.b16 %v155, %v155
  %v184 = vpack.c.b16 %v156, %v156
  %v185 = vpack.c.b16 %v157, %v157
  %v186 = vpack.c.b16 %v158, %v158
  %v187 = vpack.c.b16 %v159, %v159
  %v188 = vpack.c.b16 %v160, %v160
  %v189 = vpack.c.b16 %v161, %v161
  %v190 = vpack.c.b16 %v162, %v162
  %v191 = vpack.c.b16 %v163, %v163
  %v192 = vpack.c.b16 %v164, %v164
  %193 = vrot.lane.b32.xlu0 %v165, 32
  %v194 = vpop.permute.xlu0 %193
  %195 = vrot.lane.b32.xlu0 %v166, 32
  %v196 = vpop.permute.xlu0 %195
  %197 = vrot.lane.b32.xlu0 %v167, 32
  %v198 = vpop.permute.xlu0 %197
  %199 = vrot.lane.b32.xlu0 %v168, 32
  %v200 = vpop.permute.xlu0 %199
  %201 = vrot.lane.b32.xlu0 %v169, 32
  %v202 = vpop.permute.xlu0 %201
  %203 = vrot.lane.b32.xlu0 %v170, 32
  %v204 = vpop.permute.xlu0 %203
  %205 = vrot.lane.b32.xlu0 %v171, 32
  %v206 = vpop.permute.xlu0 %205
  %207 = vrot.lane.b32.xlu0 %v172, 32
  %v208 = vpop.permute.xlu0 %207
  %209 = vrot.lane.b32.xlu0 %v173, 32
  %v210 = vpop.permute.xlu0 %209
  %211 = vrot.lane.b32.xlu0 %v174, 32
  %v212 = vpop.permute.xlu0 %211
  %213 = vrot.lane.b32.xlu0 %v175, 32
  %v214 = vpop.permute.xlu0 %213
  %215 = vrot.lane.b32.xlu0 %v176, 32
  %v216 = vpop.permute.xlu0 %215
  %217 = vrot.lane.b32.xlu0 %v177, 32
  %v218 = vpop.permute.xlu0 %217
  %219 = vrot.lane.b32.xlu0 %v178, 32
  %v220 = vpop.permute.xlu0 %219
  %221 = vrot.lane.b32.xlu0 %v179, 32
  %v222 = vpop.permute.xlu0 %221
  %223 = vrot.lane.b32.xlu0 %v180, 32
  %v224 = vpop.permute.xlu0 %223
  %225 = vrot.lane.b32.xlu0 %v181, 32
  %v226 = vpop.permute.xlu0 %225
  %227 = vrot.lane.b32.xlu0 %v182, 32
  %v228 = vpop.permute.xlu0 %227
  %229 = vrot.lane.b32.xlu0 %v183, 32
  %v230 = vpop.permute.xlu0 %229
  %231 = vrot.lane.b32.xlu0 %v184, 32
  %v232 = vpop.permute.xlu0 %231
  %233 = vrot.lane.b32.xlu0 %v185, 32
  %v234 = vpop.permute.xlu0 %233
  %235 = vrot.lane.b32.xlu0 %v186, 32
  %v236 = vpop.permute.xlu0 %235
  %237 = vrot.lane.b32.xlu0 %v187, 32
  %v238 = vpop.permute.xlu0 %237
  %239 = vrot.lane.b32.xlu0 %v188, 32
  %v240 = vpop.permute.xlu0 %239
  %241 = vrot.lane.b32.xlu0 %v189, 32
  %v242 = vpop.permute.xlu0 %241
  %243 = vrot.lane.b32.xlu0 %v190, 32
  %v244 = vpop.permute.xlu0 %243
  %245 = vrot.lane.b32.xlu0 %v191, 32
  %v246 = vpop.permute.xlu0 %245
  %247 = vrot.lane.b32.xlu0 %v192, 32
  %v248 = vpop.permute.xlu0 %247
  %v250 = vunpack.c.l.b16 %v106
  %v251 = vpack.c.b16 %v250, %v250
  %252 = vrot.lane.b32.xlu0 %v166, 64
  %v253 = vpop.permute.xlu0 %252
  %254 = vrot.lane.b32.xlu0 %v167, 64
  %v255 = vpop.permute.xlu0 %254
  %256 = vrot.lane.b32.xlu0 %v168, 64
  %v257 = vpop.permute.xlu0 %256
  %258 = vrot.lane.b32.xlu0 %v169, 64
  %v259 = vpop.permute.xlu0 %258
  %260 = vrot.lane.b32.xlu0 %v170, 64
  %v261 = vpop.permute.xlu0 %260
  %262 = vrot.lane.b32.xlu0 %v171, 64
  %v263 = vpop.permute.xlu0 %262
  %264 = vrot.lane.b32.xlu0 %v172, 64
  %v265 = vpop.permute.xlu0 %264
  %266 = vrot.lane.b32.xlu0 %v173, 64
  %v267 = vpop.permute.xlu0 %266
  %268 = vrot.lane.b32.xlu0 %v174, 64
  %v269 = vpop.permute.xlu0 %268
  %270 = vrot.lane.b32.xlu0 %v175, 64
  %v271 = vpop.permute.xlu0 %270
  %272 = vrot.lane.b32.xlu0 %v176, 64
  %v273 = vpop.permute.xlu0 %272
  %274 = vrot.lane.b32.xlu0 %v177, 64
  %v275 = vpop.permute.xlu0 %274
  %276 = vrot.lane.b32.xlu0 %v178, 64
  %v277 = vpop.permute.xlu0 %276
  %278 = vrot.lane.b32.xlu0 %v179, 64
  %v279 = vpop.permute.xlu0 %278
  %280 = vrot.lane.b32.xlu0 %v180, 64
  %v281 = vpop.permute.xlu0 %280
  %282 = vrot.lane.b32.xlu0 %v181, 64
  %v283 = vpop.permute.xlu0 %282
  %284 = vrot.lane.b32.xlu0 %v182, 64
  %v285 = vpop.permute.xlu0 %284
  %286 = vrot.lane.b32.xlu0 %v183, 64
  %v287 = vpop.permute.xlu0 %286
  %288 = vrot.lane.b32.xlu0 %v184, 64
  %v289 = vpop.permute.xlu0 %288
  %290 = vrot.lane.b32.xlu0 %v185, 64
  %v291 = vpop.permute.xlu0 %290
  %292 = vrot.lane.b32.xlu0 %v186, 64
  %v293 = vpop.permute.xlu0 %292
  %294 = vrot.lane.b32.xlu0 %v187, 64
  %v295 = vpop.permute.xlu0 %294
  %296 = vrot.lane.b32.xlu0 %v188, 64
  %v297 = vpop.permute.xlu0 %296
  %298 = vrot.lane.b32.xlu0 %v189, 64
  %v299 = vpop.permute.xlu0 %298
  %300 = vrot.lane.b32.xlu0 %v190, 64
  %v301 = vpop.permute.xlu0 %300
  %302 = vrot.lane.b32.xlu0 %v191, 64
  %v303 = vpop.permute.xlu0 %302
  %304 = vrot.lane.b32.xlu0 %v192, 64
  %v305 = vpop.permute.xlu0 %304
  %306 = vrot.lane.b32.xlu0 %v251, 64
  %v307 = vpop.permute.xlu0 %306
  %v309 = vunpack.c.l.b16 %v107
  %v310 = vpack.c.b16 %v309, %v309
  %311 = vrot.lane.b32.xlu0 %v167, 96
  %v312 = vpop.permute.xlu0 %311
  %313 = vrot.lane.b32.xlu0 %v168, 96
  %v314 = vpop.permute.xlu0 %313
  %315 = vrot.lane.b32.xlu0 %v169, 96
  %v316 = vpop.permute.xlu0 %315
  %317 = vrot.lane.b32.xlu0 %v170, 96
  %v318 = vpop.permute.xlu0 %317
  %319 = vrot.lane.b32.xlu0 %v171, 96
  %v320 = vpop.permute.xlu0 %319
  %321 = vrot.lane.b32.xlu0 %v172, 96
  %v322 = vpop.permute.xlu0 %321
  %323 = vrot.lane.b32.xlu0 %v173, 96
  %v324 = vpop.permute.xlu0 %323
  %325 = vrot.lane.b32.xlu0 %v174, 96
  %v326 = vpop.permute.xlu0 %325
  %327 = vrot.lane.b32.xlu0 %v175, 96
  %v328 = vpop.permute.xlu0 %327
  %329 = vrot.lane.b32.xlu0 %v176, 96
  %v330 = vpop.permute.xlu0 %329
  %331 = vrot.lane.b32.xlu0 %v177, 96
  %v332 = vpop.permute.xlu0 %331
  %333 = vrot.lane.b32.xlu0 %v178, 96
  %v334 = vpop.permute.xlu0 %333
  %335 = vrot.lane.b32.xlu0 %v179, 96
  %v336 = vpop.permute.xlu0 %335
  %337 = vrot.lane.b32.xlu0 %v180, 96
  %v338 = vpop.permute.xlu0 %337
  %339 = vrot.lane.b32.xlu0 %v181, 96
  %v340 = vpop.permute.xlu0 %339
  %341 = vrot.lane.b32.xlu0 %v182, 96
  %v342 = vpop.permute.xlu0 %341
  %343 = vrot.lane.b32.xlu0 %v183, 96
  %v344 = vpop.permute.xlu0 %343
  %345 = vrot.lane.b32.xlu0 %v184, 96
  %v346 = vpop.permute.xlu0 %345
  %347 = vrot.lane.b32.xlu0 %v185, 96
  %v348 = vpop.permute.xlu0 %347
  %349 = vrot.lane.b32.xlu0 %v186, 96
  %v350 = vpop.permute.xlu0 %349
  %351 = vrot.lane.b32.xlu0 %v187, 96
  %v352 = vpop.permute.xlu0 %351
  %353 = vrot.lane.b32.xlu0 %v188, 96
  %v354 = vpop.permute.xlu0 %353
  %355 = vrot.lane.b32.xlu0 %v189, 96
  %v356 = vpop.permute.xlu0 %355
  %357 = vrot.lane.b32.xlu0 %v190, 96
  %v358 = vpop.permute.xlu0 %357
  %359 = vrot.lane.b32.xlu0 %v191, 96
  %v360 = vpop.permute.xlu0 %359
  %361 = vrot.lane.b32.xlu0 %v192, 96
  %v362 = vpop.permute.xlu0 %361
  %363 = vrot.lane.b32.xlu0 %v251, 96
  %v364 = vpop.permute.xlu0 %363
  %365 = vrot.lane.b32.xlu0 %v310, 96
  %v366 = vpop.permute.xlu0 %365
  %vm367 = vcmask 261120
  %v370 = vsel %vm367, %v77, %v194
  %v373 = vsel %vm367, %v78, %v196
  %v376 = vsel %vm367, %v79, %v198
  %v379 = vsel %vm367, %v80, %v200
  %v382 = vsel %vm367, %v81, %v202
  %v385 = vsel %vm367, %v82, %v204
  %v388 = vsel %vm367, %v83, %v206
  %v391 = vsel %vm367, %v84, %v208
  %v394 = vsel %vm367, %v85, %v210
  %v397 = vsel %vm367, %v86, %v212
  %v400 = vsel %vm367, %v87, %v214
  %v403 = vsel %vm367, %v88, %v216
  %v406 = vsel %vm367, %v89, %v218
  %v409 = vsel %vm367, %v90, %v220
  %v412 = vsel %vm367, %v91, %v222
  %v415 = vsel %vm367, %v92, %v224
  %v418 = vsel %vm367, %v93, %v226
  %v421 = vsel %vm367, %v94, %v228
  %v424 = vsel %vm367, %v95, %v230
  %v427 = vsel %vm367, %v96, %v232
  %v430 = vsel %vm367, %v97, %v234
  %v433 = vsel %vm367, %v98, %v236
  %v436 = vsel %vm367, %v99, %v238
  %v439 = vsel %vm367, %v100, %v240
  %v442 = vsel %vm367, %v101, %v242
  %v445 = vsel %vm367, %v102, %v244
  %v448 = vsel %vm367, %v103, %v246
  %v451 = vsel %vm367, %v104, %v248
  %vm452 = vcmask 523264
  %v454 = vsel %vm452, %v370, %v253
  %v456 = vsel %vm452, %v373, %v255
  %v458 = vsel %vm452, %v376, %v257
  %v460 = vsel %vm452, %v379, %v259
  %v462 = vsel %vm452, %v382, %v261
  %v464 = vsel %vm452, %v385, %v263
  %v466 = vsel %vm452, %v388, %v265
  %v468 = vsel %vm452, %v391, %v267
  %v470 = vsel %vm452, %v394, %v269
  %v472 = vsel %vm452, %v397, %v271
  %v474 = vsel %vm452, %v400, %v273
  %v476 = vsel %vm452, %v403, %v275
  %v478 = vsel %vm452, %v406, %v277
  %v480 = vsel %vm452, %v409, %v279
  %v482 = vsel %vm452, %v412, %v281
  %v484 = vsel %vm452, %v415, %v283
  %v486 = vsel %vm452, %v418, %v285
  %v488 = vsel %vm452, %v421, %v287
  %v490 = vsel %vm452, %v424, %v289
  %v492 = vsel %vm452, %v427, %v291
  %v494 = vsel %vm452, %v430, %v293
  %v496 = vsel %vm452, %v433, %v295
  %v498 = vsel %vm452, %v436, %v297
  %v500 = vsel %vm452, %v439, %v299
  %v502 = vsel %vm452, %v442, %v301
  %v504 = vsel %vm452, %v445, %v303
  %v506 = vsel %vm452, %v448, %v305
  %v508 = vsel %vm452, %v451, %v307
  %vm509 = vcmask 785408
  %v511 = vsel %vm509, %v454, %v312
  %v513 = vsel %vm509, %v456, %v314
  %v515 = vsel %vm509, %v458, %v316
  %v517 = vsel %vm509, %v460, %v318
  %v519 = vsel %vm509, %v462, %v320
  %v521 = vsel %vm509, %v464, %v322
  %v523 = vsel %vm509, %v466, %v324
  %v525 = vsel %vm509, %v468, %v326
  %v527 = vsel %vm509, %v470, %v328
  %v529 = vsel %vm509, %v472, %v330
  %v531 = vsel %vm509, %v474, %v332
  %v533 = vsel %vm509, %v476, %v334
  %v535 = vsel %vm509, %v478, %v336
  %v537 = vsel %vm509, %v480, %v338
  %v539 = vsel %vm509, %v482, %v340
  %v541 = vsel %vm509, %v484, %v342
  %v543 = vsel %vm509, %v486, %v344
  %v545 = vsel %vm509, %v488, %v346
  %v547 = vsel %vm509, %v490, %v348
  %v549 = vsel %vm509, %v492, %v350
  %v551 = vsel %vm509, %v494, %v352
  %v553 = vsel %vm509, %v496, %v354
  %v555 = vsel %vm509, %v498, %v356
  %v557 = vsel %vm509, %v500, %v358
  %v559 = vsel %vm509, %v502, %v360
  %v561 = vsel %vm509, %v504, %v362
  %v563 = vsel %vm509, %v506, %v364
  %v565 = vsel %vm509, %v508, %v366
  %v595 = vunpack.c.l.b16 %v511
  %v596 = vunpack.c.l.b16 %v513
  %v597 = vunpack.c.l.b16 %v515
  %v598 = vunpack.c.l.b16 %v517
  %v599 = vunpack.c.l.b16 %v519
  %v600 = vunpack.c.l.b16 %v521
  %v601 = vunpack.c.l.b16 %v523
  %v602 = vunpack.c.l.b16 %v525
  %v603 = vunpack.c.l.b16 %v527
  %v604 = vunpack.c.l.b16 %v529
  %v605 = vunpack.c.l.b16 %v531
  %v606 = vunpack.c.l.b16 %v533
  %v607 = vunpack.c.l.b16 %v535
  %v608 = vunpack.c.l.b16 %v537
  %v609 = vunpack.c.l.b16 %v539
  %v610 = vunpack.c.l.b16 %v541
  %v611 = vunpack.c.l.b16 %v543
  %v612 = vunpack.c.l.b16 %v545
  %v613 = vunpack.c.l.b16 %v547
  %v614 = vunpack.c.l.b16 %v549
  %v615 = vunpack.c.l.b16 %v551
  %v616 = vunpack.c.l.b16 %v553
  %v617 = vunpack.c.l.b16 %v555
  %v618 = vunpack.c.l.b16 %v557
  %v619 = vunpack.c.l.b16 %v559
  %v620 = vunpack.c.l.b16 %v561
  %v621 = vunpack.c.l.b16 %v563
  %v622 = vunpack.c.l.b16 %v565
  %v623 = vunpack.c.l.b16 %v108
  %v624 = vld [vmem:[%s1] sm:$0xff]
  %v625 = vld [vmem:[%s1 + $0x8] sm:$0xff]
  %v626 = vld [vmem:[%s1 + $0x10] sm:$0xff]
  %v627 = vld [vmem:[%s1 + $0x18] sm:$0xff]
  %v628 = vld [vmem:[%s1 + $0x20] sm:$0xff]
  %v629 = vld [vmem:[%s1 + $0x28] sm:$0xff]
  %v630 = vld [vmem:[%s1 + $0x30] sm:$0xff]
  %v631 = vld [vmem:[%s1 + $0x38] sm:$0xff]
  %v632 = vld [vmem:[%s1 + $0x40] sm:$0xff]
  %v633 = vld [vmem:[%s1 + $0x48] sm:$0xff]
  %v634 = vld [vmem:[%s1 + $0x50] sm:$0xff]
  %v635 = vld [vmem:[%s1 + $0x58] sm:$0xff]
  %v636 = vld [vmem:[%s1 + $0x60] sm:$0xff]
  %v637 = vld [vmem:[%s1 + $0x68] sm:$0xff]
  %v638 = vld [vmem:[%s1 + $0x70] sm:$0xff]
  %v639 = vld [vmem:[%s1 + $0x78] sm:$0xff]
  %v640 = vld [vmem:[%s1 + $0x80] sm:$0xff]
  %v641 = vld [vmem:[%s1 + $0x88] sm:$0xff]
  %v642 = vld [vmem:[%s1 + $0x90] sm:$0xff]
  %v643 = vld [vmem:[%s1 + $0x98] sm:$0xff]
  %v644 = vld [vmem:[%s2] sm:$0x3]
  %v646 = vperm.slane %v644, 0
  %v647 = vperm.slane %v644, 1
  %v650 = vpack.c.b16 %v596, %v595
  %v651 = vpack.c.b16 %v141, %v140
  %v652 = vpack.c.b16 %v598, %v597
  %v653 = vpack.c.b16 %v143, %v142
  %v654 = vpack.c.b16 %v600, %v599
  %v655 = vpack.c.b16 %v145, %v144
  %v656 = vpack.c.b16 %v602, %v601
  %v657 = vpack.c.b16 %v147, %v146
  %v658 = vpack.c.b16 %v604, %v603
  %v659 = vpack.c.b16 %v149, %v148
  %v660 = vpack.c.b16 %v606, %v605
  %v661 = vpack.c.b16 %v151, %v150
  %v662 = vpack.c.b16 %v608, %v607
  %v663 = vpack.c.b16 %v153, %v152
  %v664 = vpack.c.b16 %v610, %v609
  %v665 = vpack.c.b16 %v155, %v154
  %v666 = vpack.c.b16 %v612, %v611
  %v667 = vpack.c.b16 %v157, %v156
  %v668 = vpack.c.b16 %v614, %v613
  %v669 = vpack.c.b16 %v159, %v158
  %v670 = vpack.c.b16 %v616, %v615
  %v671 = vpack.c.b16 %v161, %v160
  %v672 = vpack.c.b16 %v618, %v617
  %v673 = vpack.c.b16 %v163, %v162
  %v674 = vpack.c.b16 %v620, %v619
  %v675 = vpack.c.b16 %v250, %v164
  %v676 = vpack.c.b16 %v622, %v621
  %v677 = vpack.c.b16 %v623, %v309
  %v712 = vunpack.c.l.b16 %v624
  %v713 = vunpack.c.h.b16 %v624
  %v714 = vunpack.c.l.b16 %v625
  %v715 = vunpack.c.h.b16 %v625
  %v716 = vunpack.c.l.b16 %v626
  %v717 = vunpack.c.h.b16 %v626
  %v718 = vunpack.c.l.b16 %v627
  %v719 = vunpack.c.h.b16 %v627
  %v720 = vunpack.c.l.b16 %v628
  %v721 = vunpack.c.h.b16 %v628
  %v722 = vunpack.c.l.b16 %v629
  %v723 = vunpack.c.h.b16 %v629
  %v724 = vunpack.c.l.b16 %v630
  %v725 = vunpack.c.h.b16 %v630
  %v726 = vunpack.c.l.b16 %v631
  %v727 = vunpack.c.h.b16 %v631
  %v728 = vunpack.c.l.b16 %v632
  %v729 = vunpack.c.h.b16 %v632
  %v730 = vunpack.c.l.b16 %v633
  %v731 = vunpack.c.h.b16 %v633
  %v732 = vunpack.c.l.b16 %v634
  %v733 = vunpack.c.h.b16 %v634
  %v734 = vunpack.c.l.b16 %v635
  %v735 = vunpack.c.h.b16 %v635
  %v736 = vunpack.c.l.b16 %v636
  %v737 = vunpack.c.h.b16 %v636
  %v738 = vunpack.c.l.b16 %v637
  %v739 = vunpack.c.h.b16 %v637
  %v740 = vunpack.c.l.b16 %v638
  %v741 = vunpack.c.h.b16 %v638
  %v742 = vunpack.c.l.b16 %v639
  %v743 = vunpack.c.h.b16 %v639
  %v744 = vunpack.c.l.b16 %v640
  %v745 = vunpack.c.h.b16 %v640
  %v746 = vunpack.c.l.b16 %v641
  %v747 = vunpack.c.h.b16 %v641
  %v748 = vunpack.c.l.b16 %v642
  %v749 = vunpack.c.h.b16 %v642
  %v750 = vunpack.c.l.b16 %v643
  %v751 = vunpack.c.h.b16 %v643
  %v752 = vpack.c.b16 %v714, %v712
  %v753 = vpack.c.b16 %v715, %v713
  %v754 = vpack.c.b16 %v718, %v716
  %v755 = vpack.c.b16 %v719, %v717
  %v756 = vpack.c.b16 %v722, %v720
  %v757 = vpack.c.b16 %v723, %v721
  %v758 = vpack.c.b16 %v726, %v724
  %v759 = vpack.c.b16 %v727, %v725
  %v760 = vpack.c.b16 %v730, %v728
  %v761 = vpack.c.b16 %v731, %v729
  %v762 = vpack.c.b16 %v734, %v732
  %v763 = vpack.c.b16 %v735, %v733
  %v764 = vpack.c.b16 %v738, %v736
  %v765 = vpack.c.b16 %v739, %v737
  %v766 = vpack.c.b16 %v742, %v740
  %v767 = vpack.c.b16 %v743, %v741
  %v768 = vpack.c.b16 %v746, %v744
  %v769 = vpack.c.b16 %v747, %v745
  %v770 = vpack.c.b16 %v750, %v748
  %v771 = vpack.c.b16 %v751, %v749
  %v793 = vsel %vm367, %v651, 0
  %v796 = vsel %vm367, %v653, 0
  %v799 = vsel %vm367, %v655, 0
  %v802 = vsel %vm367, %v657, 0
  %v805 = vsel %vm367, %v659, 0
  %v808 = vsel %vm367, %v661, 0
  %v811 = vsel %vm367, %v663, 0
  %v814 = vsel %vm367, %v665, 0
  %v817 = vsel %vm367, %v667, 0
  %v820 = vsel %vm367, %v669, 0
  %v823 = vsel %vm367, %v671, 0
  %v826 = vsel %vm367, %v673, 0
  %v829 = vsel %vm367, %v675, 0
  %v832 = vsel %vm367, %v677, 0
  %834 = vmatpush.bf16.msra.mxu0 %v766
  %835 = vmatpush.bf16.msra.mxu0 %v764
  %836 = vmatpush.bf16.msra.mxu0 %v762
  %837 = vmatpush.bf16.msra.mxu0 %v760
  %838 = vmatpush.bf16.msra.mxu0 %v758
  %839 = vmatpush.bf16.msra.mxu0 %v756
  %840 = vmatpush.bf16.msra.mxu0 %v754
  %841 = vmatpush.bf16.msra.mxu0 %v752
  %842 = vmatmul.bf16.gmra.mxu0 %v650
  %v843 = vpop.f32.mrf.mxu0
  %v844 = vadd.f32 %v646, %v843
  %v845 = vpop.f32.mrf.mxu0
  %v846 = vadd.f32 %v646, %v845
  %847 = vmatmul.bf16.gmra.mxu0 %v652
  %v848 = vpop.f32.mrf.mxu0
  %v849 = vadd.f32 %v646, %v848
  %v850 = vpop.f32.mrf.mxu0
  %v851 = vadd.f32 %v646, %v850
  %852 = vmatmul.bf16.gmra.mxu0 %v654
  %v853 = vpop.f32.mrf.mxu0
  %v854 = vadd.f32 %v646, %v853
  %v855 = vpop.f32.mrf.mxu0
  %v856 = vadd.f32 %v646, %v855
  %857 = vmatmul.bf16.gmra.mxu0 %v656
  %v858 = vpop.f32.mrf.mxu0
  %v859 = vadd.f32 %v646, %v858
  %v860 = vpop.f32.mrf.mxu0
  %v861 = vadd.f32 %v646, %v860
  %862 = vmatmul.bf16.gmra.mxu0 %v658
  %v863 = vpop.f32.mrf.mxu0
  %v864 = vadd.f32 %v646, %v863
  %v865 = vpop.f32.mrf.mxu0
  %v866 = vadd.f32 %v646, %v865
  %867 = vmatmul.bf16.gmra.mxu0 %v660
  %v868 = vpop.f32.mrf.mxu0
  %v869 = vadd.f32 %v646, %v868
  %v870 = vpop.f32.mrf.mxu0
  %v871 = vadd.f32 %v646, %v870
  %872 = vmatmul.bf16.gmra.mxu0 %v662
  %v873 = vpop.f32.mrf.mxu0
  %v874 = vadd.f32 %v646, %v873
  %v875 = vpop.f32.mrf.mxu0
  %v876 = vadd.f32 %v646, %v875
  %877 = vmatmul.bf16.gmra.mxu0 %v664
  %v878 = vpop.f32.mrf.mxu0
  %v879 = vadd.f32 %v646, %v878
  %v880 = vpop.f32.mrf.mxu0
  %v881 = vadd.f32 %v646, %v880
  %882 = vmatmul.bf16.gmra.mxu0 %v666
  %v883 = vpop.f32.mrf.mxu0
  %v884 = vadd.f32 %v646, %v883
  %v885 = vpop.f32.mrf.mxu0
  %v886 = vadd.f32 %v646, %v885
  %887 = vmatmul.bf16.gmra.mxu0 %v668
  %v888 = vpop.f32.mrf.mxu0
  %v889 = vadd.f32 %v646, %v888
  %v890 = vpop.f32.mrf.mxu0
  %v891 = vadd.f32 %v646, %v890
  %892 = vmatmul.bf16.gmra.mxu0 %v670
  %v893 = vpop.f32.mrf.mxu0
  %v894 = vadd.f32 %v646, %v893
  %v895 = vpop.f32.mrf.mxu0
  %v896 = vadd.f32 %v646, %v895
  %897 = vmatmul.bf16.gmra.mxu0 %v672
  %v898 = vpop.f32.mrf.mxu0
  %v899 = vadd.f32 %v646, %v898
  %v900 = vpop.f32.mrf.mxu0
  %v901 = vadd.f32 %v646, %v900
  %902 = vmatmul.bf16.gmra.mxu0 %v674
  %v903 = vpop.f32.mrf.mxu0
  %v904 = vadd.f32 %v646, %v903
  %v905 = vpop.f32.mrf.mxu0
  %v906 = vadd.f32 %v646, %v905
  %907 = vmatmul.bf16.gmra.mxu0 %v676
  %v908 = vpop.f32.mrf.mxu0
  %v909 = vadd.f32 %v646, %v908
  %v910 = vpop.f32.mrf.mxu0
  %v911 = vadd.f32 %v646, %v910
  %912 = vdwg.mxu0
  %913 = vmatpush.bf16.msra.mxu0 0
  %914 = vmatpush.bf16.msra.mxu0 0
  %915 = vmatpush.bf16.msra.mxu0 0
  %916 = vmatpush.bf16.msra.mxu0 0
  %917 = vmatpush.bf16.msra.mxu0 0
  %918 = vmatpush.bf16.msra.mxu0 0
  %919 = vmatpush.bf16.msra.mxu0 %v770
  %920 = vmatpush.bf16.msra.mxu0 %v768
  %921 = vmatmul.bf16.gmra.mxu0 %v793
  %v922 = vpop.f32.mrf.mxu0
  %v923 = vadd.f32 %v844, %v922
  %v924 = vpop.f32.mrf.mxu0
  %v925 = vadd.f32 %v846, %v924
  %926 = vmatmul.bf16.gmra.mxu0 %v796
  %v927 = vpop.f32.mrf.mxu0
  %v928 = vadd.f32 %v849, %v927
  %v929 = vpop.f32.mrf.mxu0
  %v930 = vadd.f32 %v851, %v929
  %931 = vmatmul.bf16.gmra.mxu0 %v799
  %v932 = vpop.f32.mrf.mxu0
  %v933 = vadd.f32 %v854, %v932
  %v934 = vpop.f32.mrf.mxu0
  %v935 = vadd.f32 %v856, %v934
  %936 = vmatmul.bf16.gmra.mxu0 %v802
  %v937 = vpop.f32.mrf.mxu0
  %v938 = vadd.f32 %v859, %v937
  %v939 = vpop.f32.mrf.mxu0
  %v940 = vadd.f32 %v861, %v939
  %941 = vmatmul.bf16.gmra.mxu0 %v805
  %v942 = vpop.f32.mrf.mxu0
  %v943 = vadd.f32 %v864, %v942
  %v944 = vpop.f32.mrf.mxu0
  %v945 = vadd.f32 %v866, %v944
  %946 = vmatmul.bf16.gmra.mxu0 %v808
  %v947 = vpop.f32.mrf.mxu0
  %v948 = vadd.f32 %v869, %v947
  %v949 = vpop.f32.mrf.mxu0
  %v950 = vadd.f32 %v871, %v949
  %951 = vmatmul.bf16.gmra.mxu0 %v811
  %v952 = vpop.f32.mrf.mxu0
  %v953 = vadd.f32 %v874, %v952
  %v954 = vpop.f32.mrf.mxu0
  %v955 = vadd.f32 %v876, %v954
  %956 = vmatmul.bf16.gmra.mxu0 %v814
  %v957 = vpop.f32.mrf.mxu0
  %v958 = vadd.f32 %v879, %v957
  %v959 = vpop.f32.mrf.mxu0
  %v960 = vadd.f32 %v881, %v959
  %961 = vmatmul.bf16.gmra.mxu0 %v817
  %v962 = vpop.f32.mrf.mxu0
  %v963 = vadd.f32 %v884, %v962
  %v964 = vpop.f32.mrf.mxu0
  %v965 = vadd.f32 %v886, %v964
  %966 = vmatmul.bf16.gmra.mxu0 %v820
  %v967 = vpop.f32.mrf.mxu0
  %v968 = vadd.f32 %v889, %v967
  %v969 = vpop.f32.mrf.mxu0
  %v970 = vadd.f32 %v891, %v969
  %971 = vmatmul.bf16.gmra.mxu0 %v823
  %v972 = vpop.f32.mrf.mxu0
  %v973 = vadd.f32 %v894, %v972
  %v974 = vpop.f32.mrf.mxu0
  %v975 = vadd.f32 %v896, %v974
  %976 = vmatmul.bf16.gmra.mxu0 %v826
  %v977 = vpop.f32.mrf.mxu0
  %v978 = vadd.f32 %v899, %v977
  %v979 = vpop.f32.mrf.mxu0
  %v980 = vadd.f32 %v901, %v979
  %981 = vmatmul.bf16.gmra.mxu0 %v829
  %v982 = vpop.f32.mrf.mxu0
  %v983 = vadd.f32 %v904, %v982
  %v984 = vpop.f32.mrf.mxu0
  %v985 = vadd.f32 %v906, %v984
  %986 = vmatmul.bf16.gmra.mxu0 %v832
  %v987 = vpop.f32.mrf.mxu0
  %v988 = vadd.f32 %v909, %v987
  %v989 = vpop.f32.mrf.mxu0
  %v990 = vadd.f32 %v911, %v989
  %991 = vdwg.mxu0
  %992 = vmatpush.bf16.msra.mxu0 %v767
  %993 = vmatpush.bf16.msra.mxu0 %v765
  %994 = vmatpush.bf16.msra.mxu0 %v763
  %995 = vmatpush.bf16.msra.mxu0 %v761
  %996 = vmatpush.bf16.msra.mxu0 %v759
  %997 = vmatpush.bf16.msra.mxu0 %v757
  %998 = vmatpush.bf16.msra.mxu0 %v755
  %999 = vmatpush.bf16.msra.mxu0 %v753
  %1000 = vmatmul.bf16.gmra.mxu0 %v650
  %v1001 = vpop.f32.mrf.mxu0
  %v1002 = vadd.f32 %v647, %v1001
  %v1003 = vpop.f32.mrf.mxu0
  %v1004 = vadd.f32 %v647, %v1003
  %1005 = vmatmul.bf16.gmra.mxu0 %v652
  %v1006 = vpop.f32.mrf.mxu0
  %v1007 = vadd.f32 %v647, %v1006
  %v1008 = vpop.f32.mrf.mxu0
  %v1009 = vadd.f32 %v647, %v1008
  %1010 = vmatmul.bf16.gmra.mxu0 %v654
  %v1011 = vpop.f32.mrf.mxu0
  %v1012 = vadd.f32 %v647, %v1011
  %v1013 = vpop.f32.mrf.mxu0
  %v1014 = vadd.f32 %v647, %v1013
  %1015 = vmatmul.bf16.gmra.mxu0 %v656
  %v1016 = vpop.f32.mrf.mxu0
  %v1017 = vadd.f32 %v647, %v1016
  %v1018 = vpop.f32.mrf.mxu0
  %v1019 = vadd.f32 %v647, %v1018
  %1020 = vmatmul.bf16.gmra.mxu0 %v658
  %v1021 = vpop.f32.mrf.mxu0
  %v1022 = vadd.f32 %v647, %v1021
  %v1023 = vpop.f32.mrf.mxu0
  %v1024 = vadd.f32 %v647, %v1023
  %1025 = vmatmul.bf16.gmra.mxu0 %v660
  %v1026 = vpop.f32.mrf.mxu0
  %v1027 = vadd.f32 %v647, %v1026
  %v1028 = vpop.f32.mrf.mxu0
  %v1029 = vadd.f32 %v647, %v1028
  %1030 = vmatmul.bf16.gmra.mxu0 %v662
  %v1031 = vpop.f32.mrf.mxu0
  %v1032 = vadd.f32 %v647, %v1031
  %v1033 = vpop.f32.mrf.mxu0
  %v1034 = vadd.f32 %v647, %v1033
  %1035 = vmatmul.bf16.gmra.mxu0 %v664
  %v1036 = vpop.f32.mrf.mxu0
  %v1037 = vadd.f32 %v647, %v1036
  %v1038 = vpop.f32.mrf.mxu0
  %v1039 = vadd.f32 %v647, %v1038
  %1040 = vmatmul.bf16.gmra.mxu0 %v666
  %v1041 = vpop.f32.mrf.mxu0
  %v1042 = vadd.f32 %v647, %v1041
  %v1043 = vpop.f32.mrf.mxu0
  %v1044 = vadd.f32 %v647, %v1043
  %1045 = vmatmul.bf16.gmra.mxu0 %v668
  %v1046 = vpop.f32.mrf.mxu0
  %v1047 = vadd.f32 %v647, %v1046
  %v1048 = vpop.f32.mrf.mxu0
  %v1049 = vadd.f32 %v647, %v1048
  %1050 = vmatmul.bf16.gmra.mxu0 %v670
  %v1051 = vpop.f32.mrf.mxu0
  %v1052 = vadd.f32 %v647, %v1051
  %v1053 = vpop.f32.mrf.mxu0
  %v1054 = vadd.f32 %v647, %v1053
  %1055 = vmatmul.bf16.gmra.mxu0 %v672
  %v1056 = vpop.f32.mrf.mxu0
  %v1057 = vadd.f32 %v647, %v1056
  %v1058 = vpop.f32.mrf.mxu0
  %v1059 = vadd.f32 %v647, %v1058
  %1060 = vmatmul.bf16.gmra.mxu0 %v674
  %v1061 = vpop.f32.mrf.mxu0
  %v1062 = vadd.f32 %v647, %v1061
  %v1063 = vpop.f32.mrf.mxu0
  %v1064 = vadd.f32 %v647, %v1063
  %1065 = vmatmul.bf16.gmra.mxu0 %v676
  %v1066 = vpop.f32.mrf.mxu0
  %v1067 = vadd.f32 %v647, %v1066
  %v1068 = vpop.f32.mrf.mxu0
  %v1069 = vadd.f32 %v647, %v1068
  %1070 = vdwg.mxu0
  %1071 = vmatpush.bf16.msra.mxu0 0
  %1072 = vmatpush.bf16.msra.mxu0 0
  %1073 = vmatpush.bf16.msra.mxu0 0
  %1074 = vmatpush.bf16.msra.mxu0 0
  %1075 = vmatpush.bf16.msra.mxu0 0
  %1076 = vmatpush.bf16.msra.mxu0 0
  %1077 = vmatpush.bf16.msra.mxu0 %v771
  %1078 = vmatpush.bf16.msra.mxu0 %v769
  %1079 = vmatmul.bf16.gmra.mxu0 %v793
  %v1080 = vpop.f32.mrf.mxu0
  %v1081 = vadd.f32 %v1002, %v1080
  %v1082 = vpop.f32.mrf.mxu0
  %v1083 = vadd.f32 %v1004, %v1082
  %1084 = vmatmul.bf16.gmra.mxu0 %v796
  %v1085 = vpop.f32.mrf.mxu0
  %v1086 = vadd.f32 %v1007, %v1085
  %v1087 = vpop.f32.mrf.mxu0
  %v1088 = vadd.f32 %v1009, %v1087
  %1089 = vmatmul.bf16.gmra.mxu0 %v799
  %v1090 = vpop.f32.mrf.mxu0
  %v1091 = vadd.f32 %v1012, %v1090
  %v1092 = vpop.f32.mrf.mxu0
  %v1093 = vadd.f32 %v1014, %v1092
  %1094 = vmatmul.bf16.gmra.mxu0 %v802
  %v1095 = vpop.f32.mrf.mxu0
  %v1096 = vadd.f32 %v1017, %v1095
  %v1097 = vpop.f32.mrf.mxu0
  %v1098 = vadd.f32 %v1019, %v1097
  %1099 = vmatmul.bf16.gmra.mxu0 %v805
  %v1100 = vpop.f32.mrf.mxu0
  %v1101 = vadd.f32 %v1022, %v1100
  %v1102 = vpop.f32.mrf.mxu0
  %v1103 = vadd.f32 %v1024, %v1102
  %1104 = vmatmul.bf16.gmra.mxu0 %v808
  %v1105 = vpop.f32.mrf.mxu0
  %v1106 = vadd.f32 %v1027, %v1105
  %v1107 = vpop.f32.mrf.mxu0
  %v1108 = vadd.f32 %v1029, %v1107
  %1109 = vmatmul.bf16.gmra.mxu0 %v811
  %v1110 = vpop.f32.mrf.mxu0
  %v1111 = vadd.f32 %v1032, %v1110
  %v1112 = vpop.f32.mrf.mxu0
  %v1113 = vadd.f32 %v1034, %v1112
  %1114 = vmatmul.bf16.gmra.mxu0 %v814
  %v1115 = vpop.f32.mrf.mxu0
  %v1116 = vadd.f32 %v1037, %v1115
  %v1117 = vpop.f32.mrf.mxu0
  %v1118 = vadd.f32 %v1039, %v1117
  %1119 = vmatmul.bf16.gmra.mxu0 %v817
  %v1120 = vpop.f32.mrf.mxu0
  %v1121 = vadd.f32 %v1042, %v1120
  %v1122 = vpop.f32.mrf.mxu0
  %v1123 = vadd.f32 %v1044, %v1122
  %1124 = vmatmul.bf16.gmra.mxu0 %v820
  %v1125 = vpop.f32.mrf.mxu0
  %v1126 = vadd.f32 %v1047, %v1125
  %v1127 = vpop.f32.mrf.mxu0
  %v1128 = vadd.f32 %v1049, %v1127
  %1129 = vmatmul.bf16.gmra.mxu0 %v823
  %v1130 = vpop.f32.mrf.mxu0
  %v1131 = vadd.f32 %v1052, %v1130
  %v1132 = vpop.f32.mrf.mxu0
  %v1133 = vadd.f32 %v1054, %v1132
  %1134 = vmatmul.bf16.gmra.mxu0 %v826
  %v1135 = vpop.f32.mrf.mxu0
  %v1136 = vadd.f32 %v1057, %v1135
  %v1137 = vpop.f32.mrf.mxu0
  %v1138 = vadd.f32 %v1059, %v1137
  %1139 = vmatmul.bf16.gmra.mxu0 %v829
  %v1140 = vpop.f32.mrf.mxu0
  %v1141 = vadd.f32 %v1062, %v1140
  %v1142 = vpop.f32.mrf.mxu0
  %v1143 = vadd.f32 %v1064, %v1142
  %1144 = vmatmul.bf16.gmra.mxu0 %v832
  %v1145 = vpop.f32.mrf.mxu0
  %v1146 = vadd.f32 %v1067, %v1145
  %v1147 = vpop.f32.mrf.mxu0
  %v1148 = vadd.f32 %v1069, %v1147
  %1149 = vdwg.mxu0
  %v1150 = vtanh.pop %v923
  %v1151 = vtanh.pop %v1081
  %v1152 = vtanh.pop %v925
  %v1153 = vtanh.pop %v1083
  %v1154 = vtanh.pop %v928
  %v1155 = vtanh.pop %v1086
  %v1156 = vtanh.pop %v930
  %v1157 = vtanh.pop %v1088
  %v1158 = vtanh.pop %v933
  %v1159 = vtanh.pop %v1091
  %v1160 = vtanh.pop %v935
  %v1161 = vtanh.pop %v1093
  %v1162 = vtanh.pop %v938
  %v1163 = vtanh.pop %v1096
  %v1164 = vtanh.pop %v940
  %v1165 = vtanh.pop %v1098
  %v1166 = vtanh.pop %v943
  %v1167 = vtanh.pop %v1101
  %v1168 = vtanh.pop %v945
  %v1169 = vtanh.pop %v1103
  %v1170 = vtanh.pop %v948
  %v1171 = vtanh.pop %v1106
  %v1172 = vtanh.pop %v950
  %v1173 = vtanh.pop %v1108
  %v1174 = vtanh.pop %v953
  %v1175 = vtanh.pop %v1111
  %v1176 = vtanh.pop %v955
  %v1177 = vtanh.pop %v1113
  %v1178 = vtanh.pop %v958
  %v1179 = vtanh.pop %v1116
  %v1180 = vtanh.pop %v960
  %v1181 = vtanh.pop %v1118
  %v1182 = vtanh.pop %v963
  %v1183 = vtanh.pop %v1121
  %v1184 = vtanh.pop %v965
  %v1185 = vtanh.pop %v1123
  %v1186 = vtanh.pop %v968
  %v1187 = vtanh.pop %v1126
  %v1188 = vtanh.pop %v970
  %v1189 = vtanh.pop %v1128
  %v1190 = vtanh.pop %v973
  %v1191 = vtanh.pop %v1131
  %v1192 = vtanh.pop %v975
  %v1193 = vtanh.pop %v1133
  %v1194 = vtanh.pop %v978
  %v1195 = vtanh.pop %v1136
  %v1196 = vtanh.pop %v980
  %v1197 = vtanh.pop %v1138
  %v1198 = vtanh.pop %v983
  %v1199 = vtanh.pop %v1141
  %v1200 = vtanh.pop %v985
  %v1201 = vtanh.pop %v1143
  %v1202 = vtanh.pop %v988
  %v1203 = vtanh.pop %v1146
  %v1204 = vtanh.pop %v990
  %v1205 = vtanh.pop %v1148
  %v1206 = vadd.f32 %v1150, %v1152
  %v1207 = vadd.f32 %v1151, %v1153
  %v1208 = vadd.f32 %v1154, %v1156
  %v1209 = vadd.f32 %v1155, %v1157
  %v1210 = vadd.f32 %v1158, %v1160
  %v1211 = vadd.f32 %v1159, %v1161
  %v1212 = vadd.f32 %v1162, %v1164
  %v1213 = vadd.f32 %v1163, %v1165
  %v1214 = vadd.f32 %v1166, %v1168
  %v1215 = vadd.f32 %v1167, %v1169
  %v1216 = vadd.f32 %v1170, %v1172
  %v1217 = vadd.f32 %v1171, %v1173
  %v1218 = vadd.f32 %v1174, %v1176
  %v1219 = vadd.f32 %v1175, %v1177
  %v1220 = vadd.f32 %v1178, %v1180
  %v1221 = vadd.f32 %v1179, %v1181
  %v1222 = vadd.f32 %v1182, %v1184
  %v1223 = vadd.f32 %v1183, %v1185
  %v1224 = vadd.f32 %v1186, %v1188
  %v1225 = vadd.f32 %v1187, %v1189
  %v1226 = vadd.f32 %v1190, %v1192
  %v1227 = vadd.f32 %v1191, %v1193
  %v1228 = vadd.f32 %v1194, %v1196
  %v1229 = vadd.f32 %v1195, %v1197
  %v1230 = vadd.f32 %v1198, %v1200
  %v1231 = vadd.f32 %v1199, %v1201
  %v1232 = vadd.f32 %v1202, %v1204
  %v1233 = vadd.f32 %v1203, %v1205
  %v1234 = vmul.f32 %v1206, 0.5
  %v1235 = vmul.f32 %v1207, 0.5
  %v1236 = vmul.f32 %v1208, 0.5
  %v1237 = vmul.f32 %v1209, 0.5
  %v1238 = vmul.f32 %v1210, 0.5
  %v1239 = vmul.f32 %v1211, 0.5
  %v1240 = vmul.f32 %v1212, 0.5
  %v1241 = vmul.f32 %v1213, 0.5
  %v1242 = vmul.f32 %v1214, 0.5
  %v1243 = vmul.f32 %v1215, 0.5
  %v1244 = vmul.f32 %v1216, 0.5
  %v1245 = vmul.f32 %v1217, 0.5
  %v1246 = vmul.f32 %v1218, 0.5
  %v1247 = vmul.f32 %v1219, 0.5
  %v1248 = vmul.f32 %v1220, 0.5
  %v1249 = vmul.f32 %v1221, 0.5
  %v1250 = vmul.f32 %v1222, 0.5
  %v1251 = vmul.f32 %v1223, 0.5
  %v1252 = vmul.f32 %v1224, 0.5
  %v1253 = vmul.f32 %v1225, 0.5
  %v1254 = vmul.f32 %v1226, 0.5
  %v1255 = vmul.f32 %v1227, 0.5
  %v1256 = vmul.f32 %v1228, 0.5
  %v1257 = vmul.f32 %v1229, 0.5
  %v1258 = vmul.f32 %v1230, 0.5
  %v1259 = vmul.f32 %v1231, 0.5
  %v1260 = vmul.f32 %v1232, 0.5
  %v1261 = vmul.f32 %v1233, 0.5
  %v1262 = vpack.c.bf16 %v1236, %v1234
  %v1263 = vpack.c.bf16 %v1237, %v1235
  %v1264 = vpack.c.bf16 %v1240, %v1238
  %v1265 = vpack.c.bf16 %v1241, %v1239
  %v1266 = vpack.c.bf16 %v1244, %v1242
  %v1267 = vpack.c.bf16 %v1245, %v1243
  %v1268 = vpack.c.bf16 %v1248, %v1246
  %v1269 = vpack.c.bf16 %v1249, %v1247
  %v1270 = vpack.c.bf16 %v1252, %v1250
  %v1271 = vpack.c.bf16 %v1253, %v1251
  %v1272 = vpack.c.bf16 %v1256, %v1254
  %v1273 = vpack.c.bf16 %v1257, %v1255
  %v1274 = vpack.c.bf16 %v1260, %v1258
  %v1275 = vpack.c.bf16 %v1261, %v1259
  %v1276 = vld [vmem:[%s3] sm:$0xf]
  %v1277 = vld [vmem:[%s3 + $0x4] sm:$0xf]
  %v1278 = vld [vmem:[%s3 + $0x8] sm:$0xf]
  %v1279 = vld [vmem:[%s3 + $0xc] sm:$0xf]
  %v1280 = vld [vmem:[%s3 + $0x10] sm:$0xf]
  %v1281 = vld [vmem:[%s3 + $0x14] sm:$0xf]
  %v1282 = vld [vmem:[%s3 + $0x18] sm:$0xf]
  %v1283 = vld [vmem:[%s3 + $0x1c] sm:$0xf]
  %v1284 = vld [vmem:[%s3 + $0x20] sm:$0xf]
  %v1285 = vld [vmem:[%s3 + $0x24] sm:$0xf]
  %v1286 = vld [vmem:[%s3 + $0x28] sm:$0xf]
  %v1287 = vld [vmem:[%s3 + $0x2c] sm:$0xf]
  %v1288 = vld [vmem:[%s3 + $0x30] sm:$0xf]
  %v1289 = vld [vmem:[%s3 + $0x34] sm:$0xf]
  %v1290 = vld [vmem:[%s3 + $0x38] sm:$0xf]
  %v1291 = vld [vmem:[%s3 + $0x3c] sm:$0xf]
  %v1292 = vld [vmem:[%s3 + $0x40] sm:$0xf]
  %v1293 = vld [vmem:[%s3 + $0x44] sm:$0xf]
  %v1294 = vld [vmem:[%s3 + $0x48] sm:$0xf]
  %v1295 = vld [vmem:[%s3 + $0x4c] sm:$0xf]
  %v1296 = vld [vmem:[%s3 + $0x50] sm:$0xf]
  %v1318 = vunpack.c.l.b16 %v1276
  %v1319 = vunpack.c.l.b16 %v1277
  %v1320 = vunpack.c.l.b16 %v1278
  %v1321 = vunpack.c.l.b16 %v1279
  %v1322 = vunpack.c.l.b16 %v1280
  %v1323 = vunpack.c.l.b16 %v1281
  %v1324 = vunpack.c.l.b16 %v1282
  %v1325 = vunpack.c.l.b16 %v1283
  %v1326 = vunpack.c.l.b16 %v1284
  %v1327 = vunpack.c.l.b16 %v1285
  %v1328 = vunpack.c.l.b16 %v1286
  %v1329 = vunpack.c.l.b16 %v1287
  %v1330 = vunpack.c.l.b16 %v1288
  %v1331 = vunpack.c.l.b16 %v1289
  %v1332 = vunpack.c.l.b16 %v1290
  %v1333 = vunpack.c.l.b16 %v1291
  %v1334 = vunpack.c.l.b16 %v1292
  %v1335 = vunpack.c.l.b16 %v1293
  %v1336 = vunpack.c.l.b16 %v1294
  %v1337 = vunpack.c.l.b16 %v1295
  %v1338 = vunpack.c.l.b16 %v1296
  %v1339 = vpack.c.b16 %v1319, %v1318
  %v1340 = vpack.c.b16 %v1321, %v1320
  %v1341 = vpack.c.b16 %v1323, %v1322
  %v1342 = vpack.c.b16 %v1325, %v1324
  %v1343 = vpack.c.b16 %v1327, %v1326
  %v1344 = vpack.c.b16 %v1329, %v1328
  %v1345 = vpack.c.b16 %v1331, %v1330
  %v1346 = vpack.c.b16 %v1333, %v1332
  %v1347 = vpack.c.b16 %v1335, %v1334
  %v1348 = vpack.c.b16 %v1337, %v1336
  %v1349 = vpack.c.b16 %v1338, %v1338
  %vm1360 = vcmask 326656
  %v1362 = vsel %vm1360, %v1263, 0
  %v1365 = vsel %vm1360, %v1265, 0
  %v1368 = vsel %vm1360, %v1267, 0
  %v1371 = vsel %vm1360, %v1269, 0
  %v1374 = vsel %vm1360, %v1271, 0
  %v1377 = vsel %vm1360, %v1273, 0
  %v1380 = vsel %vm1360, %v1275, 0
  %vm1382 = vcmask 1043456
  %v1384 = vsel %vm1382, %v1349, 0
  %1386 = vmatpush.bf16.msra.mxu0 %v1346
  %1387 = vmatpush.bf16.msra.mxu0 %v1345
  %1388 = vmatpush.bf16.msra.mxu0 %v1344
  %1389 = vmatpush.bf16.msra.mxu0 %v1343
  %1390 = vmatpush.bf16.msra.mxu0 %v1342
  %1391 = vmatpush.bf16.msra.mxu0 %v1341
  %1392 = vmatpush.bf16.msra.mxu0 %v1340
  %1393 = vmatpush.bf16.msra.mxu0 %v1339
  %1394 = vmatmul.bf16.gmra.mxu0 %v1262
  %v1395 = vpop.f32.mrf.mxu0
  %v1396 = vadd.f32 0.0, %v1395
  %v1397 = vpop.f32.mrf.mxu0
  %v1398 = vadd.f32 0.0, %v1397
  %1399 = vmatmul.bf16.gmra.mxu0 %v1264
  %v1400 = vpop.f32.mrf.mxu0
  %v1401 = vadd.f32 0.0, %v1400
  %v1402 = vpop.f32.mrf.mxu0
  %v1403 = vadd.f32 0.0, %v1402
  %1404 = vmatmul.bf16.gmra.mxu0 %v1266
  %v1405 = vpop.f32.mrf.mxu0
  %v1406 = vadd.f32 0.0, %v1405
  %v1407 = vpop.f32.mrf.mxu0
  %v1408 = vadd.f32 0.0, %v1407
  %1409 = vmatmul.bf16.gmra.mxu0 %v1268
  %v1410 = vpop.f32.mrf.mxu0
  %v1411 = vadd.f32 0.0, %v1410
  %v1412 = vpop.f32.mrf.mxu0
  %v1413 = vadd.f32 0.0, %v1412
  %1414 = vmatmul.bf16.gmra.mxu0 %v1270
  %v1415 = vpop.f32.mrf.mxu0
  %v1416 = vadd.f32 0.0, %v1415
  %v1417 = vpop.f32.mrf.mxu0
  %v1418 = vadd.f32 0.0, %v1417
  %1419 = vmatmul.bf16.gmra.mxu0 %v1272
  %v1420 = vpop.f32.mrf.mxu0
  %v1421 = vadd.f32 0.0, %v1420
  %v1422 = vpop.f32.mrf.mxu0
  %v1423 = vadd.f32 0.0, %v1422
  %1424 = vmatmul.bf16.gmra.mxu0 %v1274
  %v1425 = vpop.f32.mrf.mxu0
  %v1426 = vadd.f32 0.0, %v1425
  %v1427 = vpop.f32.mrf.mxu0
  %v1428 = vadd.f32 0.0, %v1427
  %1429 = vdwg.mxu0
  %1430 = vmatpush.bf16.msra.mxu0 0
  %1431 = vmatpush.bf16.msra.mxu0 0
  %1432 = vmatpush.bf16.msra.mxu0 0
  %1433 = vmatpush.bf16.msra.mxu0 0
  %1434 = vmatpush.bf16.msra.mxu0 0
  %1435 = vmatpush.bf16.msra.mxu0 %v1384
  %1436 = vmatpush.bf16.msra.mxu0 %v1348
  %1437 = vmatpush.bf16.msra.mxu0 %v1347
  %1438 = vmatmul.bf16.gmra.mxu0 %v1362
  %v1439 = vpop.f32.mrf.mxu0
  %v1440 = vadd.f32 %v1396, %v1439
  %v1441 = vpop.f32.mrf.mxu0
  %v1442 = vadd.f32 %v1398, %v1441
  %1443 = vmatmul.bf16.gmra.mxu0 %v1365
  %v1444 = vpop.f32.mrf.mxu0
  %v1445 = vadd.f32 %v1401, %v1444
  %v1446 = vpop.f32.mrf.mxu0
  %v1447 = vadd.f32 %v1403, %v1446
  %1448 = vmatmul.bf16.gmra.mxu0 %v1368
  %v1449 = vpop.f32.mrf.mxu0
  %v1450 = vadd.f32 %v1406, %v1449
  %v1451 = vpop.f32.mrf.mxu0
  %v1452 = vadd.f32 %v1408, %v1451
  %1453 = vmatmul.bf16.gmra.mxu0 %v1371
  %v1454 = vpop.f32.mrf.mxu0
  %v1455 = vadd.f32 %v1411, %v1454
  %v1456 = vpop.f32.mrf.mxu0
  %v1457 = vadd.f32 %v1413, %v1456
  %1458 = vmatmul.bf16.gmra.mxu0 %v1374
  %v1459 = vpop.f32.mrf.mxu0
  %v1460 = vadd.f32 %v1416, %v1459
  %v1461 = vpop.f32.mrf.mxu0
  %v1462 = vadd.f32 %v1418, %v1461
  %1463 = vmatmul.bf16.gmra.mxu0 %v1377
  %v1464 = vpop.f32.mrf.mxu0
  %v1465 = vadd.f32 %v1421, %v1464
  %v1466 = vpop.f32.mrf.mxu0
  %v1467 = vadd.f32 %v1423, %v1466
  %1468 = vmatmul.bf16.gmra.mxu0 %v1380
  %v1469 = vpop.f32.mrf.mxu0
  %v1470 = vadd.f32 %v1426, %v1469
  %v1471 = vpop.f32.mrf.mxu0
  %v1472 = vadd.f32 %v1428, %v1471
  %1473 = vdwg.mxu0
  %v1474 = vpack.c.bf16 %v1440, %v1440
  %v1475 = vpack.c.bf16 %v1442, %v1442
  %v1476 = vpack.c.bf16 %v1445, %v1445
  %v1477 = vpack.c.bf16 %v1447, %v1447
  %v1478 = vpack.c.bf16 %v1450, %v1450
  %v1479 = vpack.c.bf16 %v1452, %v1452
  %v1480 = vpack.c.bf16 %v1455, %v1455
  %v1481 = vpack.c.bf16 %v1457, %v1457
  %v1482 = vpack.c.bf16 %v1460, %v1460
  %v1483 = vpack.c.bf16 %v1462, %v1462
  %v1484 = vpack.c.bf16 %v1465, %v1465
  %v1485 = vpack.c.bf16 %v1467, %v1467
  %v1486 = vpack.c.bf16 %v1470, %v1470
  %v1487 = vpack.c.bf16 %v1472, %v1472
  %v1498 = vunpack.c.l.b16 %v1475
  %v1499 = vunpack.c.l.b16 %v1476
  %v1500 = vunpack.c.l.b16 %v1477
  %v1501 = vunpack.c.l.b16 %v1478
  %v1502 = vunpack.c.l.b16 %v1479
  %v1503 = vunpack.c.l.b16 %v1480
  %v1504 = vunpack.c.l.b16 %v1481
  %v1505 = vunpack.c.l.b16 %v1482
  %v1506 = vunpack.c.l.b16 %v1483
  %v1507 = vunpack.c.l.b16 %v1484
  %v1508 = vpack.c.b16 %v1498, %v1498
  %v1509 = vpack.c.b16 %v1499, %v1499
  %v1510 = vpack.c.b16 %v1500, %v1500
  %v1511 = vpack.c.b16 %v1501, %v1501
  %v1512 = vpack.c.b16 %v1502, %v1502
  %v1513 = vpack.c.b16 %v1503, %v1503
  %v1514 = vpack.c.b16 %v1504, %v1504
  %v1515 = vpack.c.b16 %v1505, %v1505
  %v1516 = vpack.c.b16 %v1506, %v1506
  %v1517 = vpack.c.b16 %v1507, %v1507
  %1518 = vrot.lane.b32.xlu0 %v1508, 84
  %v1519 = vpop.permute.xlu0 %1518
  %1520 = vrot.lane.b32.xlu0 %v1509, 84
  %v1521 = vpop.permute.xlu0 %1520
  %1522 = vrot.lane.b32.xlu0 %v1510, 84
  %v1523 = vpop.permute.xlu0 %1522
  %1524 = vrot.lane.b32.xlu0 %v1511, 84
  %v1525 = vpop.permute.xlu0 %1524
  %1526 = vrot.lane.b32.xlu0 %v1512, 84
  %v1527 = vpop.permute.xlu0 %1526
  %1528 = vrot.lane.b32.xlu0 %v1513, 84
  %v1529 = vpop.permute.xlu0 %1528
  %1530 = vrot.lane.b32.xlu0 %v1514, 84
  %v1531 = vpop.permute.xlu0 %1530
  %1532 = vrot.lane.b32.xlu0 %v1515, 84
  %v1533 = vpop.permute.xlu0 %1532
  %1534 = vrot.lane.b32.xlu0 %v1516, 84
  %v1535 = vpop.permute.xlu0 %1534
  %1536 = vrot.lane.b32.xlu0 %v1517, 84
  %v1537 = vpop.permute.xlu0 %1536
  %v1539 = vunpack.c.l.b16 %v1485
  %v1540 = vpack.c.b16 %v1539, %v1539
  %1541 = vrot.lane.b32.xlu0 %v1509, 40
  %v1542 = vpop.permute.xlu0 %1541
  %1543 = vrot.lane.b32.xlu0 %v1510, 40
  %v1544 = vpop.permute.xlu0 %1543
  %1545 = vrot.lane.b32.xlu0 %v1511, 40
  %v1546 = vpop.permute.xlu0 %1545
  %1547 = vrot.lane.b32.xlu0 %v1512, 40
  %v1548 = vpop.permute.xlu0 %1547
  %1549 = vrot.lane.b32.xlu0 %v1513, 40
  %v1550 = vpop.permute.xlu0 %1549
  %1551 = vrot.lane.b32.xlu0 %v1514, 40
  %v1552 = vpop.permute.xlu0 %1551
  %1553 = vrot.lane.b32.xlu0 %v1515, 40
  %v1554 = vpop.permute.xlu0 %1553
  %1555 = vrot.lane.b32.xlu0 %v1516, 40
  %v1556 = vpop.permute.xlu0 %1555
  %1557 = vrot.lane.b32.xlu0 %v1517, 40
  %v1558 = vpop.permute.xlu0 %1557
  %1559 = vrot.lane.b32.xlu0 %v1540, 40
  %v1560 = vpop.permute.xlu0 %1559
  %v1562 = vunpack.c.l.b16 %v1486
  %v1563 = vpack.c.b16 %v1562, %v1562
  %1564 = vrot.lane.b32.xlu0 %v1510, 124
  %v1565 = vpop.permute.xlu0 %1564
  %1566 = vrot.lane.b32.xlu0 %v1511, 124
  %v1567 = vpop.permute.xlu0 %1566
  %1568 = vrot.lane.b32.xlu0 %v1512, 124
  %v1569 = vpop.permute.xlu0 %1568
  %1570 = vrot.lane.b32.xlu0 %v1513, 124
  %v1571 = vpop.permute.xlu0 %1570
  %1572 = vrot.lane.b32.xlu0 %v1514, 124
  %v1573 = vpop.permute.xlu0 %1572
  %1574 = vrot.lane.b32.xlu0 %v1515, 124
  %v1575 = vpop.permute.xlu0 %1574
  %1576 = vrot.lane.b32.xlu0 %v1516, 124
  %v1577 = vpop.permute.xlu0 %1576
  %1578 = vrot.lane.b32.xlu0 %v1517, 124
  %v1579 = vpop.permute.xlu0 %1578
  %1580 = vrot.lane.b32.xlu0 %v1540, 124
  %v1581 = vpop.permute.xlu0 %1580
  %1582 = vrot.lane.b32.xlu0 %v1563, 124
  %v1583 = vpop.permute.xlu0 %1582
  %v1585 = vunpack.c.l.b16 %v1487
  %v1586 = vpack.c.b16 %v1585, %v1585
  %1587 = vrot.lane.b32.xlu0 %v1511, 80
  %v1588 = vpop.permute.xlu0 %1587
  %1589 = vrot.lane.b32.xlu0 %v1512, 80
  %v1590 = vpop.permute.xlu0 %1589
  %1591 = vrot.lane.b32.xlu0 %v1513, 80
  %v1592 = vpop.permute.xlu0 %1591
  %1593 = vrot.lane.b32.xlu0 %v1514, 80
  %v1594 = vpop.permute.xlu0 %1593
  %1595 = vrot.lane.b32.xlu0 %v1515, 80
  %v1596 = vpop.permute.xlu0 %1595
  %1597 = vrot.lane.b32.xlu0 %v1516, 80
  %v1598 = vpop.permute.xlu0 %1597
  %1599 = vrot.lane.b32.xlu0 %v1517, 80
  %v1600 = vpop.permute.xlu0 %1599
  %1601 = vrot.lane.b32.xlu0 %v1540, 80
  %v1602 = vpop.permute.xlu0 %1601
  %1603 = vrot.lane.b32.xlu0 %v1563, 80
  %v1604 = vpop.permute.xlu0 %1603
  %1605 = vrot.lane.b32.xlu0 %v1586, 80
  %v1606 = vpop.permute.xlu0 %1605
  %vm1607 = vcmask 687104
  %v1610 = vsel %vm1607, %v1474, %v1519
  %v1613 = vsel %vm1607, %v1475, %v1521
  %v1616 = vsel %vm1607, %v1476, %v1523
  %v1619 = vsel %vm1607, %v1477, %v1525
  %v1622 = vsel %vm1607, %v1478, %v1527
  %v1625 = vsel %vm1607, %v1479, %v1529
  %v1628 = vsel %vm1607, %v1480, %v1531
  %v1631 = vsel %vm1607, %v1481, %v1533
  %v1634 = vsel %vm1607, %v1482, %v1535
  %v1637 = vsel %vm1607, %v1483, %v1537
  %v1639 = vsel %vm1360, %v1519, %v1542
  %v1641 = vsel %vm1360, %v1521, %v1544
  %v1643 = vsel %vm1360, %v1523, %v1546
  %v1645 = vsel %vm1360, %v1525, %v1548
  %v1647 = vsel %vm1360, %v1527, %v1550
  %v1649 = vsel %vm1360, %v1529, %v1552
  %v1651 = vsel %vm1360, %v1531, %v1554
  %v1653 = vsel %vm1360, %v1533, %v1556
  %v1655 = vsel %vm1360, %v1535, %v1558
  %v1657 = vsel %vm1360, %v1537, %v1560
  %vm1658 = vcmask 1014784
  %v1660 = vsel %vm1658, %v1639, %v1565
  %v1662 = vsel %vm1658, %v1641, %v1567
  %v1664 = vsel %vm1658, %v1643, %v1569
  %v1666 = vsel %vm1658, %v1645, %v1571
  %v1668 = vsel %vm1658, %v1647, %v1573
  %v1670 = vsel %vm1658, %v1649, %v1575
  %v1672 = vsel %vm1658, %v1651, %v1577
  %v1674 = vsel %vm1658, %v1653, %v1579
  %v1676 = vsel %vm1658, %v1655, %v1581
  %v1678 = vsel %vm1658, %v1657, %v1583
  %vm1679 = vcmask 654336
  %v1681 = vsel %vm1679, %v1565, %v1588
  %v1683 = vsel %vm1679, %v1567, %v1590
  %v1685 = vsel %vm1679, %v1569, %v1592
  %v1687 = vsel %vm1679, %v1571, %v1594
  %v1689 = vsel %vm1679, %v1573, %v1596
  %v1691 = vsel %vm1679, %v1575, %v1598
  %v1693 = vsel %vm1679, %v1577, %v1600
  %v1695 = vsel %vm1679, %v1579, %v1602
  %v1697 = vsel %vm1679, %v1581, %v1604
  %v1699 = vsel %vm1679, %v1583, %v1606
  %v1730 = vunpack.c.l.b16 %v1610
  %v1731 = vunpack.c.l.b16 %v1660
  %v1732 = vunpack.c.l.b16 %v1681
  %v1733 = vunpack.c.l.b16 %v1588
  %v1734 = vunpack.c.l.b16 %v1613
  %v1735 = vunpack.c.l.b16 %v1662
  %v1736 = vunpack.c.l.b16 %v1683
  %v1737 = vunpack.c.l.b16 %v1590
  %v1738 = vunpack.c.l.b16 %v1616
  %v1739 = vunpack.c.l.b16 %v1664
  %v1740 = vunpack.c.l.b16 %v1685
  %v1741 = vunpack.c.l.b16 %v1592
  %v1742 = vunpack.c.l.b16 %v1619
  %v1743 = vunpack.c.l.b16 %v1666
  %v1744 = vunpack.c.l.b16 %v1687
  %v1745 = vunpack.c.l.b16 %v1594
  %v1746 = vunpack.c.l.b16 %v1622
  %v1747 = vunpack.c.l.b16 %v1668
  %v1748 = vunpack.c.l.b16 %v1689
  %v1749 = vunpack.c.l.b16 %v1596
  %v1750 = vunpack.c.l.b16 %v1625
  %v1751 = vunpack.c.l.b16 %v1670
  %v1752 = vunpack.c.l.b16 %v1691
  %v1753 = vunpack.c.l.b16 %v1598
  %v1754 = vunpack.c.l.b16 %v1628
  %v1755 = vunpack.c.l.b16 %v1672
  %v1756 = vunpack.c.l.b16 %v1693
  %v1757 = vunpack.c.l.b16 %v1600
  %v1758 = vunpack.c.l.b16 %v1631
  %v1759 = vunpack.c.l.b16 %v1674
  %v1760 = vunpack.c.l.b16 %v1695
  %v1761 = vunpack.c.l.b16 %v1602
  %v1762 = vunpack.c.l.b16 %v1634
  %v1763 = vunpack.c.l.b16 %v1676
  %v1764 = vunpack.c.l.b16 %v1697
  %v1765 = vunpack.c.l.b16 %v1604
  %v1766 = vunpack.c.l.b16 %v1637
  %v1767 = vunpack.c.l.b16 %v1678
  %v1768 = vunpack.c.l.b16 %v1699
  %v1769 = vunpack.c.l.b16 %v1606
  %v1770 = vld [vmem:[%s4] sm:$0xff]
  %v1771 = vld [vmem:[%s4 + $0x8] sm:$0xff]
  %v1772 = vld [vmem:[%s4 + $0x10] sm:$0xff]
  %v1773 = vld [vmem:[%s4 + $0x18] sm:$0xff]
  %v1774 = vld [vmem:[%s4 + $0x20] sm:$0xff]
  %v1775 = vld [vmem:[%s4 + $0x28] sm:$0xff]
  %v1776 = vld [vmem:[%s4 + $0x30] sm:$0xff]
  %v1777 = vld [vmem:[%s4 + $0x38] sm:$0xff]
  %v1778 = vld [vmem:[%s4 + $0x40] sm:$0xff]
  %v1779 = vld [vmem:[%s4 + $0x48] sm:$0xff]
  %v1780 = vld [vmem:[%s4 + $0x50] sm:$0xff]
  %v1781 = vld [vmem:[%s4 + $0x58] sm:$0xff]
  %v1782 = vld [vmem:[%s4 + $0x60] sm:$0xff]
  %v1783 = vld [vmem:[%s4 + $0x68] sm:$0xff]
  %v1784 = vld [vmem:[%s4 + $0x70] sm:$0xff]
  %v1785 = vld [vmem:[%s4 + $0x78] sm:$0xff]
  %v1786 = vld [vmem:[%s4 + $0x80] sm:$0xff]
  %v1787 = vld [vmem:[%s4 + $0x88] sm:$0xff]
  %v1788 = vld [vmem:[%s4 + $0x90] sm:$0xff]
  %v1789 = vld [vmem:[%s4 + $0x98] sm:$0xff]
  %v1790 = vld [vmem:[%s4 + $0xa0] sm:$0xff]
  %v1791 = vld [vmem:[%s4 + $0xa8] sm:$0xff]
  %v1792 = vld [vmem:[%s4 + $0xb0] sm:$0xff]
  %v1793 = vld [vmem:[%s4 + $0xb8] sm:$0xff]
  %v1794 = vld [vmem:[%s4 + $0xc0] sm:$0xff]
  %v1795 = vld [vmem:[%s4 + $0xc8] sm:$0xff]
  %v1796 = vld [vmem:[%s4 + $0xd0] sm:$0xff]
  %v1797 = vld [vmem:[%s4 + $0xd8] sm:$0xff]
  %v1798 = vld [vmem:[%s4 + $0xe0] sm:$0xff]
  %v1799 = vld [vmem:[%s4 + $0xe8] sm:$0xff]
  %v1800 = vld [vmem:[%s4 + $0xf0] sm:$0xff]
  %v1801 = vld [vmem:[%s4 + $0xf8] sm:$0xff]
  %v1802 = vld [vmem:[%s4 + $0x100] sm:$0xff]
  %v1803 = vld [vmem:[%s4 + $0x108] sm:$0xff]
  %v1804 = vld [vmem:[%s4 + $0x110] sm:$0xff]
  %v1805 = vld [vmem:[%s4 + $0x118] sm:$0xff]
  %v1806 = vld [vmem:[%s4 + $0x120] sm:$0xff]
  %v1807 = vld [vmem:[%s4 + $0x128] sm:$0xff]
  %v1808 = vld [vmem:[%s4 + $0x130] sm:$0xff]
  %v1809 = vld [vmem:[%s4 + $0x138] sm:$0xff]
  %v1810 = vld [vmem:[%s4 + $0x140] sm:$0xff]
  %v1811 = vld [vmem:[%s4 + $0x148] sm:$0xff]
  %v1812 = vld [vmem:[%s4 + $0x150] sm:$0xff]
  %v1813 = vld [vmem:[%s4 + $0x158] sm:$0xff]
  %v1814 = vld [vmem:[%s4 + $0x160] sm:$0xff]
  %v1815 = vld [vmem:[%s4 + $0x168] sm:$0xff]
  %v1816 = vld [vmem:[%s4 + $0x170] sm:$0xff]
  %v1817 = vld [vmem:[%s4 + $0x178] sm:$0xff]
  %v1818 = vld [vmem:[%s4 + $0x180] sm:$0xff]
  %v1819 = vld [vmem:[%s4 + $0x188] sm:$0xff]
  %v1820 = vld [vmem:[%s4 + $0x190] sm:$0xff]
  %v1821 = vld [vmem:[%s4 + $0x198] sm:$0xff]
  %v1822 = vld [vmem:[%s4 + $0x1a0] sm:$0x33]
  %v1823 = vld [vmem:[%s5] sm:$0x3]
  %v1825 = vperm.slane %v1823, 0
  %v1826 = vperm.slane %v1823, 1
  %v1829 = vpack.c.b16 %v1734, %v1730
  %v1830 = vpack.c.b16 %v1735, %v1731
  %v1831 = vpack.c.b16 %v1736, %v1732
  %v1832 = vpack.c.b16 %v1737, %v1733
  %v1833 = vpack.c.b16 %v1742, %v1738
  %v1834 = vpack.c.b16 %v1743, %v1739
  %v1835 = vpack.c.b16 %v1744, %v1740
  %v1836 = vpack.c.b16 %v1745, %v1741
  %v1837 = vpack.c.b16 %v1750, %v1746
  %v1838 = vpack.c.b16 %v1751, %v1747
  %v1839 = vpack.c.b16 %v1752, %v1748
  %v1840 = vpack.c.b16 %v1753, %v1749
  %v1841 = vpack.c.b16 %v1758, %v1754
  %v1842 = vpack.c.b16 %v1759, %v1755
  %v1843 = vpack.c.b16 %v1760, %v1756
  %v1844 = vpack.c.b16 %v1761, %v1757
  %v1845 = vpack.c.b16 %v1766, %v1762
  %v1846 = vpack.c.b16 %v1767, %v1763
  %v1847 = vpack.c.b16 %v1768, %v1764
  %v1848 = vpack.c.b16 %v1769, %v1765
  %v1917 = vunpack.c.l.b16 %v1770
  %v1918 = vunpack.c.h.b16 %v1770
  %v1919 = vunpack.c.l.b16 %v1771
  %v1920 = vunpack.c.h.b16 %v1771
  %v1921 = vunpack.c.l.b16 %v1772
  %v1922 = vunpack.c.h.b16 %v1772
  %v1923 = vunpack.c.l.b16 %v1773
  %v1924 = vunpack.c.h.b16 %v1773
  %v1925 = vunpack.c.l.b16 %v1774
  %v1926 = vunpack.c.h.b16 %v1774
  %v1927 = vunpack.c.l.b16 %v1775
  %v1928 = vunpack.c.h.b16 %v1775
  %v1929 = vunpack.c.l.b16 %v1776
  %v1930 = vunpack.c.h.b16 %v1776
  %v1931 = vunpack.c.l.b16 %v1777
  %v1932 = vunpack.c.h.b16 %v1777
  %v1933 = vunpack.c.l.b16 %v1778
  %v1934 = vunpack.c.h.b16 %v1778
  %v1935 = vunpack.c.l.b16 %v1779
  %v1936 = vunpack.c.h.b16 %v1779
  %v1937 = vunpack.c.l.b16 %v1780
  %v1938 = vunpack.c.h.b16 %v1780
  %v1939 = vunpack.c.l.b16 %v1781
  %v1940 = vunpack.c.h.b16 %v1781
  %v1941 = vunpack.c.l.b16 %v1782
  %v1942 = vunpack.c.h.b16 %v1782
  %v1943 = vunpack.c.l.b16 %v1783
  %v1944 = vunpack.c.h.b16 %v1783
  %v1945 = vunpack.c.l.b16 %v1784
  %v1946 = vunpack.c.h.b16 %v1784
  %v1947 = vunpack.c.l.b16 %v1785
  %v1948 = vunpack.c.h.b16 %v1785
  %v1949 = vunpack.c.l.b16 %v1786
  %v1950 = vunpack.c.h.b16 %v1786
  %v1951 = vunpack.c.l.b16 %v1787
  %v1952 = vunpack.c.h.b16 %v1787
  %v1953 = vunpack.c.l.b16 %v1788
  %v1954 = vunpack.c.h.b16 %v1788
  %v1955 = vunpack.c.l.b16 %v1789
  %v1956 = vunpack.c.h.b16 %v1789
  %v1957 = vunpack.c.l.b16 %v1790
  %v1958 = vunpack.c.h.b16 %v1790
  %v1959 = vunpack.c.l.b16 %v1791
  %v1960 = vunpack.c.h.b16 %v1791
  %v1961 = vunpack.c.l.b16 %v1792
  %v1962 = vunpack.c.h.b16 %v1792
  %v1963 = vunpack.c.l.b16 %v1793
  %v1964 = vunpack.c.h.b16 %v1793
  %v1965 = vunpack.c.l.b16 %v1794
  %v1966 = vunpack.c.h.b16 %v1794
  %v1967 = vunpack.c.l.b16 %v1795
  %v1968 = vunpack.c.h.b16 %v1795
  %v1969 = vunpack.c.l.b16 %v1796
  %v1970 = vunpack.c.h.b16 %v1796
  %v1971 = vunpack.c.l.b16 %v1797
  %v1972 = vunpack.c.h.b16 %v1797
  %v1973 = vunpack.c.l.b16 %v1798
  %v1974 = vunpack.c.h.b16 %v1798
  %v1975 = vunpack.c.l.b16 %v1799
  %v1976 = vunpack.c.h.b16 %v1799
  %v1977 = vunpack.c.l.b16 %v1800
  %v1978 = vunpack.c.h.b16 %v1800
  %v1979 = vunpack.c.l.b16 %v1801
  %v1980 = vunpack.c.h.b16 %v1801
  %v1981 = vunpack.c.l.b16 %v1802
  %v1982 = vunpack.c.h.b16 %v1802
  %v1983 = vunpack.c.l.b16 %v1803
  %v1984 = vunpack.c.h.b16 %v1803
  %v1985 = vunpack.c.l.b16 %v1804
  %v1986 = vunpack.c.h.b16 %v1804
  %v1987 = vunpack.c.l.b16 %v1805
  %v1988 = vunpack.c.h.b16 %v1805
  %v1989 = vunpack.c.l.b16 %v1806
  %v1990 = vunpack.c.h.b16 %v1806
  %v1991 = vunpack.c.l.b16 %v1807
  %v1992 = vunpack.c.h.b16 %v1807
  %v1993 = vunpack.c.l.b16 %v1808
  %v1994 = vunpack.c.h.b16 %v1808
  %v1995 = vunpack.c.l.b16 %v1809
  %v1996 = vunpack.c.h.b16 %v1809
  %v1997 = vunpack.c.l.b16 %v1810
  %v1998 = vunpack.c.h.b16 %v1810
  %v1999 = vunpack.c.l.b16 %v1811
  %v2000 = vunpack.c.h.b16 %v1811
  %v2001 = vunpack.c.l.b16 %v1812
  %v2002 = vunpack.c.h.b16 %v1812
  %v2003 = vunpack.c.l.b16 %v1813
  %v2004 = vunpack.c.h.b16 %v1813
  %v2005 = vunpack.c.l.b16 %v1814
  %v2006 = vunpack.c.h.b16 %v1814
  %v2007 = vunpack.c.l.b16 %v1815
  %v2008 = vunpack.c.h.b16 %v1815
  %v2009 = vunpack.c.l.b16 %v1816
  %v2010 = vunpack.c.h.b16 %v1816
  %v2011 = vunpack.c.l.b16 %v1817
  %v2012 = vunpack.c.h.b16 %v1817
  %v2013 = vunpack.c.l.b16 %v1818
  %v2014 = vunpack.c.h.b16 %v1818
  %v2015 = vunpack.c.l.b16 %v1819
  %v2016 = vunpack.c.h.b16 %v1819
  %v2017 = vunpack.c.l.b16 %v1820
  %v2018 = vunpack.c.h.b16 %v1820
  %v2019 = vunpack.c.l.b16 %v1821
  %v2020 = vunpack.c.h.b16 %v1821
  %v2021 = vunpack.c.l.b16 %v1822
  %v2022 = vunpack.c.h.b16 %v1822
  %v2023 = vpack.c.b16 %v1919, %v1917
  %v2024 = vpack.c.b16 %v1920, %v1918
  %v2025 = vpack.c.b16 %v1923, %v1921
  %v2026 = vpack.c.b16 %v1924, %v1922
  %v2027 = vpack.c.b16 %v1927, %v1925
  %v2028 = vpack.c.b16 %v1928, %v1926
  %v2029 = vpack.c.b16 %v1931, %v1929
  %v2030 = vpack.c.b16 %v1932, %v1930
  %v2031 = vpack.c.b16 %v1935, %v1933
  %v2032 = vpack.c.b16 %v1936, %v1934
  %v2033 = vpack.c.b16 %v1939, %v1937
  %v2034 = vpack.c.b16 %v1940, %v1938
  %v2035 = vpack.c.b16 %v1943, %v1941
  %v2036 = vpack.c.b16 %v1944, %v1942
  %v2037 = vpack.c.b16 %v1947, %v1945
  %v2038 = vpack.c.b16 %v1948, %v1946
  %v2039 = vpack.c.b16 %v1951, %v1949
  %v2040 = vpack.c.b16 %v1952, %v1950
  %v2041 = vpack.c.b16 %v1955, %v1953
  %v2042 = vpack.c.b16 %v1956, %v1954
  %v2043 = vpack.c.b16 %v1959, %v1957
  %v2044 = vpack.c.b16 %v1960, %v1958
  %v2045 = vpack.c.b16 %v1963, %v1961
  %v2046 = vpack.c.b16 %v1964, %v1962
  %v2047 = vpack.c.b16 %v1967, %v1965
  %v2048 = vpack.c.b16 %v1968, %v1966
  %v2049 = vpack.c.b16 %v1971, %v1969
  %v2050 = vpack.c.b16 %v1972, %v1970
  %v2051 = vpack.c.b16 %v1975, %v1973
  %v2052 = vpack.c.b16 %v1976, %v1974
  %v2053 = vpack.c.b16 %v1979, %v1977
  %v2054 = vpack.c.b16 %v1980, %v1978
  %v2055 = vpack.c.b16 %v1983, %v1981
  %v2056 = vpack.c.b16 %v1984, %v1982
  %v2057 = vpack.c.b16 %v1987, %v1985
  %v2058 = vpack.c.b16 %v1988, %v1986
  %v2059 = vpack.c.b16 %v1991, %v1989
  %v2060 = vpack.c.b16 %v1992, %v1990
  %v2061 = vpack.c.b16 %v1995, %v1993
  %v2062 = vpack.c.b16 %v1996, %v1994
  %v2063 = vpack.c.b16 %v1999, %v1997
  %v2064 = vpack.c.b16 %v2000, %v1998
  %v2065 = vpack.c.b16 %v2003, %v2001
  %v2066 = vpack.c.b16 %v2004, %v2002
  %v2067 = vpack.c.b16 %v2007, %v2005
  %v2068 = vpack.c.b16 %v2008, %v2006
  %v2069 = vpack.c.b16 %v2011, %v2009
  %v2070 = vpack.c.b16 %v2012, %v2010
  %v2071 = vpack.c.b16 %v2015, %v2013
  %v2072 = vpack.c.b16 %v2016, %v2014
  %v2073 = vpack.c.b16 %v2019, %v2017
  %v2074 = vpack.c.b16 %v2020, %v2018
  %v2075 = vpack.c.b16 %v2021, %v2021
  %v2076 = vpack.c.b16 %v2022, %v2022
  %vm2129 = vcmask 293888
  %v2131 = vsel %vm2129, %v1832, 0
  %v2134 = vsel %vm2129, %v1836, 0
  %v2137 = vsel %vm2129, %v1840, 0
  %v2140 = vsel %vm2129, %v1844, 0
  %v2143 = vsel %vm2129, %v1848, 0
  %vm2145 = vcmask 1041408
  %v2147 = vsel %vm2145, %v2075, 0
  %v2150 = vsel %vm2145, %v2076, 0
  %2152 = vmatpush.bf16.msra.mxu0 %v2037
  %2153 = vmatpush.bf16.msra.mxu0 %v2035
  %2154 = vmatpush.bf16.msra.mxu0 %v2033
  %2155 = vmatpush.bf16.msra.mxu0 %v2031
  %2156 = vmatpush.bf16.msra.mxu0 %v2029
  %2157 = vmatpush.bf16.msra.mxu0 %v2027
  %2158 = vmatpush.bf16.msra.mxu0 %v2025
  %2159 = vmatpush.bf16.msra.mxu0 %v2023
  %2160 = vmatmul.bf16.gmra.mxu0 %v1829
  %v2161 = vpop.f32.mrf.mxu0
  %v2162 = vadd.f32 %v1825, %v2161
  %v2163 = vpop.f32.mrf.mxu0
  %v2164 = vadd.f32 %v1825, %v2163
  %2165 = vmatmul.bf16.gmra.mxu0 %v1833
  %v2166 = vpop.f32.mrf.mxu0
  %v2167 = vadd.f32 %v1825, %v2166
  %v2168 = vpop.f32.mrf.mxu0
  %v2169 = vadd.f32 %v1825, %v2168
  %2170 = vmatmul.bf16.gmra.mxu0 %v1837
  %v2171 = vpop.f32.mrf.mxu0
  %v2172 = vadd.f32 %v1825, %v2171
  %v2173 = vpop.f32.mrf.mxu0
  %v2174 = vadd.f32 %v1825, %v2173
  %2175 = vmatmul.bf16.gmra.mxu0 %v1841
  %v2176 = vpop.f32.mrf.mxu0
  %v2177 = vadd.f32 %v1825, %v2176
  %v2178 = vpop.f32.mrf.mxu0
  %v2179 = vadd.f32 %v1825, %v2178
  %2180 = vmatmul.bf16.gmra.mxu0 %v1845
  %v2181 = vpop.f32.mrf.mxu0
  %v2182 = vadd.f32 %v1825, %v2181
  %v2183 = vpop.f32.mrf.mxu0
  %v2184 = vadd.f32 %v1825, %v2183
  %2185 = vdwg.mxu0
  %2186 = vmatpush.bf16.msra.mxu0 %v2053
  %2187 = vmatpush.bf16.msra.mxu0 %v2051
  %2188 = vmatpush.bf16.msra.mxu0 %v2049
  %2189 = vmatpush.bf16.msra.mxu0 %v2047
  %2190 = vmatpush.bf16.msra.mxu0 %v2045
  %2191 = vmatpush.bf16.msra.mxu0 %v2043
  %2192 = vmatpush.bf16.msra.mxu0 %v2041
  %2193 = vmatpush.bf16.msra.mxu0 %v2039
  %2194 = vmatmul.bf16.gmra.mxu0 %v1830
  %v2195 = vpop.f32.mrf.mxu0
  %v2196 = vadd.f32 %v2162, %v2195
  %v2197 = vpop.f32.mrf.mxu0
  %v2198 = vadd.f32 %v2164, %v2197
  %2199 = vmatmul.bf16.gmra.mxu0 %v1834
  %v2200 = vpop.f32.mrf.mxu0
  %v2201 = vadd.f32 %v2167, %v2200
  %v2202 = vpop.f32.mrf.mxu0
  %v2203 = vadd.f32 %v2169, %v2202
  %2204 = vmatmul.bf16.gmra.mxu0 %v1838
  %v2205 = vpop.f32.mrf.mxu0
  %v2206 = vadd.f32 %v2172, %v2205
  %v2207 = vpop.f32.mrf.mxu0
  %v2208 = vadd.f32 %v2174, %v2207
  %2209 = vmatmul.bf16.gmra.mxu0 %v1842
  %v2210 = vpop.f32.mrf.mxu0
  %v2211 = vadd.f32 %v2177, %v2210
  %v2212 = vpop.f32.mrf.mxu0
  %v2213 = vadd.f32 %v2179, %v2212
  %2214 = vmatmul.bf16.gmra.mxu0 %v1846
  %v2215 = vpop.f32.mrf.mxu0
  %v2216 = vadd.f32 %v2182, %v2215
  %v2217 = vpop.f32.mrf.mxu0
  %v2218 = vadd.f32 %v2184, %v2217
  %2219 = vdwg.mxu0
  %2220 = vmatpush.bf16.msra.mxu0 %v2069
  %2221 = vmatpush.bf16.msra.mxu0 %v2067
  %2222 = vmatpush.bf16.msra.mxu0 %v2065
  %2223 = vmatpush.bf16.msra.mxu0 %v2063
  %2224 = vmatpush.bf16.msra.mxu0 %v2061
  %2225 = vmatpush.bf16.msra.mxu0 %v2059
  %2226 = vmatpush.bf16.msra.mxu0 %v2057
  %2227 = vmatpush.bf16.msra.mxu0 %v2055
  %2228 = vmatmul.bf16.gmra.mxu0 %v1831
  %v2229 = vpop.f32.mrf.mxu0
  %v2230 = vadd.f32 %v2196, %v2229
  %v2231 = vpop.f32.mrf.mxu0
  %v2232 = vadd.f32 %v2198, %v2231
  %2233 = vmatmul.bf16.gmra.mxu0 %v1835
  %v2234 = vpop.f32.mrf.mxu0
  %v2235 = vadd.f32 %v2201, %v2234
  %v2236 = vpop.f32.mrf.mxu0
  %v2237 = vadd.f32 %v2203, %v2236
  %2238 = vmatmul.bf16.gmra.mxu0 %v1839
  %v2239 = vpop.f32.mrf.mxu0
  %v2240 = vadd.f32 %v2206, %v2239
  %v2241 = vpop.f32.mrf.mxu0
  %v2242 = vadd.f32 %v2208, %v2241
  %2243 = vmatmul.bf16.gmra.mxu0 %v1843
  %v2244 = vpop.f32.mrf.mxu0
  %v2245 = vadd.f32 %v2211, %v2244
  %v2246 = vpop.f32.mrf.mxu0
  %v2247 = vadd.f32 %v2213, %v2246
  %2248 = vmatmul.bf16.gmra.mxu0 %v1847
  %v2249 = vpop.f32.mrf.mxu0
  %v2250 = vadd.f32 %v2216, %v2249
  %v2251 = vpop.f32.mrf.mxu0
  %v2252 = vadd.f32 %v2218, %v2251
  %2253 = vdwg.mxu0
  %2254 = vmatpush.bf16.msra.mxu0 0
  %2255 = vmatpush.bf16.msra.mxu0 0
  %2256 = vmatpush.bf16.msra.mxu0 0
  %2257 = vmatpush.bf16.msra.mxu0 0
  %2258 = vmatpush.bf16.msra.mxu0 0
  %2259 = vmatpush.bf16.msra.mxu0 %v2147
  %2260 = vmatpush.bf16.msra.mxu0 %v2073
  %2261 = vmatpush.bf16.msra.mxu0 %v2071
  %2262 = vmatmul.bf16.gmra.mxu0 %v2131
  %v2263 = vpop.f32.mrf.mxu0
  %v2264 = vadd.f32 %v2230, %v2263
  %v2265 = vpop.f32.mrf.mxu0
  %v2266 = vadd.f32 %v2232, %v2265
  %2267 = vmatmul.bf16.gmra.mxu0 %v2134
  %v2268 = vpop.f32.mrf.mxu0
  %v2269 = vadd.f32 %v2235, %v2268
  %v2270 = vpop.f32.mrf.mxu0
  %v2271 = vadd.f32 %v2237, %v2270
  %2272 = vmatmul.bf16.gmra.mxu0 %v2137
  %v2273 = vpop.f32.mrf.mxu0
  %v2274 = vadd.f32 %v2240, %v2273
  %v2275 = vpop.f32.mrf.mxu0
  %v2276 = vadd.f32 %v2242, %v2275
  %2277 = vmatmul.bf16.gmra.mxu0 %v2140
  %v2278 = vpop.f32.mrf.mxu0
  %v2279 = vadd.f32 %v2245, %v2278
  %v2280 = vpop.f32.mrf.mxu0
  %v2281 = vadd.f32 %v2247, %v2280
  %2282 = vmatmul.bf16.gmra.mxu0 %v2143
  %v2283 = vpop.f32.mrf.mxu0
  %v2284 = vadd.f32 %v2250, %v2283
  %v2285 = vpop.f32.mrf.mxu0
  %v2286 = vadd.f32 %v2252, %v2285
  %2287 = vdwg.mxu0
  %2288 = vmatpush.bf16.msra.mxu0 %v2038
  %2289 = vmatpush.bf16.msra.mxu0 %v2036
  %2290 = vmatpush.bf16.msra.mxu0 %v2034
  %2291 = vmatpush.bf16.msra.mxu0 %v2032
  %2292 = vmatpush.bf16.msra.mxu0 %v2030
  %2293 = vmatpush.bf16.msra.mxu0 %v2028
  %2294 = vmatpush.bf16.msra.mxu0 %v2026
  %2295 = vmatpush.bf16.msra.mxu0 %v2024
  %2296 = vmatmul.bf16.gmra.mxu0 %v1829
  %v2297 = vpop.f32.mrf.mxu0
  %v2298 = vadd.f32 %v1826, %v2297
  %v2299 = vpop.f32.mrf.mxu0
  %v2300 = vadd.f32 %v1826, %v2299
  %2301 = vmatmul.bf16.gmra.mxu0 %v1833
  %v2302 = vpop.f32.mrf.mxu0
  %v2303 = vadd.f32 %v1826, %v2302
  %v2304 = vpop.f32.mrf.mxu0
  %v2305 = vadd.f32 %v1826, %v2304
  %2306 = vmatmul.bf16.gmra.mxu0 %v1837
  %v2307 = vpop.f32.mrf.mxu0
  %v2308 = vadd.f32 %v1826, %v2307
  %v2309 = vpop.f32.mrf.mxu0
  %v2310 = vadd.f32 %v1826, %v2309
  %2311 = vmatmul.bf16.gmra.mxu0 %v1841
  %v2312 = vpop.f32.mrf.mxu0
  %v2313 = vadd.f32 %v1826, %v2312
  %v2314 = vpop.f32.mrf.mxu0
  %v2315 = vadd.f32 %v1826, %v2314
  %2316 = vmatmul.bf16.gmra.mxu0 %v1845
  %v2317 = vpop.f32.mrf.mxu0
  %v2318 = vadd.f32 %v1826, %v2317
  %v2319 = vpop.f32.mrf.mxu0
  %v2320 = vadd.f32 %v1826, %v2319
  %2321 = vdwg.mxu0
  %2322 = vmatpush.bf16.msra.mxu0 %v2054
  %2323 = vmatpush.bf16.msra.mxu0 %v2052
  %2324 = vmatpush.bf16.msra.mxu0 %v2050
  %2325 = vmatpush.bf16.msra.mxu0 %v2048
  %2326 = vmatpush.bf16.msra.mxu0 %v2046
  %2327 = vmatpush.bf16.msra.mxu0 %v2044
  %2328 = vmatpush.bf16.msra.mxu0 %v2042
  %2329 = vmatpush.bf16.msra.mxu0 %v2040
  %2330 = vmatmul.bf16.gmra.mxu0 %v1830
  %v2331 = vpop.f32.mrf.mxu0
  %v2332 = vadd.f32 %v2298, %v2331
  %v2333 = vpop.f32.mrf.mxu0
  %v2334 = vadd.f32 %v2300, %v2333
  %2335 = vmatmul.bf16.gmra.mxu0 %v1834
  %v2336 = vpop.f32.mrf.mxu0
  %v2337 = vadd.f32 %v2303, %v2336
  %v2338 = vpop.f32.mrf.mxu0
  %v2339 = vadd.f32 %v2305, %v2338
  %2340 = vmatmul.bf16.gmra.mxu0 %v1838
  %v2341 = vpop.f32.mrf.mxu0
  %v2342 = vadd.f32 %v2308, %v2341
  %v2343 = vpop.f32.mrf.mxu0
  %v2344 = vadd.f32 %v2310, %v2343
  %2345 = vmatmul.bf16.gmra.mxu0 %v1842
  %v2346 = vpop.f32.mrf.mxu0
  %v2347 = vadd.f32 %v2313, %v2346
  %v2348 = vpop.f32.mrf.mxu0
  %v2349 = vadd.f32 %v2315, %v2348
  %2350 = vmatmul.bf16.gmra.mxu0 %v1846
  %v2351 = vpop.f32.mrf.mxu0
  %v2352 = vadd.f32 %v2318, %v2351
  %v2353 = vpop.f32.mrf.mxu0
  %v2354 = vadd.f32 %v2320, %v2353
  %2355 = vdwg.mxu0
  %2356 = vmatpush.bf16.msra.mxu0 %v2070
  %2357 = vmatpush.bf16.msra.mxu0 %v2068
  %2358 = vmatpush.bf16.msra.mxu0 %v2066
  %2359 = vmatpush.bf16.msra.mxu0 %v2064
  %2360 = vmatpush.bf16.msra.mxu0 %v2062
  %2361 = vmatpush.bf16.msra.mxu0 %v2060
  %2362 = vmatpush.bf16.msra.mxu0 %v2058
  %2363 = vmatpush.bf16.msra.mxu0 %v2056
  %2364 = vmatmul.bf16.gmra.mxu0 %v1831
  %v2365 = vpop.f32.mrf.mxu0
  %v2366 = vadd.f32 %v2332, %v2365
  %v2367 = vpop.f32.mrf.mxu0
  %v2368 = vadd.f32 %v2334, %v2367
  %2369 = vmatmul.bf16.gmra.mxu0 %v1835
  %v2370 = vpop.f32.mrf.mxu0
  %v2371 = vadd.f32 %v2337, %v2370
  %v2372 = vpop.f32.mrf.mxu0
  %v2373 = vadd.f32 %v2339, %v2372
  %2374 = vmatmul.bf16.gmra.mxu0 %v1839
  %v2375 = vpop.f32.mrf.mxu0
  %v2376 = vadd.f32 %v2342, %v2375
  %v2377 = vpop.f32.mrf.mxu0
  %v2378 = vadd.f32 %v2344, %v2377
  %2379 = vmatmul.bf16.gmra.mxu0 %v1843
  %v2380 = vpop.f32.mrf.mxu0
  %v2381 = vadd.f32 %v2347, %v2380
  %v2382 = vpop.f32.mrf.mxu0
  %v2383 = vadd.f32 %v2349, %v2382
  %2384 = vmatmul.bf16.gmra.mxu0 %v1847
  %v2385 = vpop.f32.mrf.mxu0
  %v2386 = vadd.f32 %v2352, %v2385
  %v2387 = vpop.f32.mrf.mxu0
  %v2388 = vadd.f32 %v2354, %v2387
  %2389 = vdwg.mxu0
  %2390 = vmatpush.bf16.msra.mxu0 0
  %2391 = vmatpush.bf16.msra.mxu0 0
  %2392 = vmatpush.bf16.msra.mxu0 0
  %2393 = vmatpush.bf16.msra.mxu0 0
  %2394 = vmatpush.bf16.msra.mxu0 0
  %2395 = vmatpush.bf16.msra.mxu0 %v2150
  %2396 = vmatpush.bf16.msra.mxu0 %v2074
  %2397 = vmatpush.bf16.msra.mxu0 %v2072
  %2398 = vmatmul.bf16.gmra.mxu0 %v2131
  %v2399 = vpop.f32.mrf.mxu0
  %v2400 = vadd.f32 %v2366, %v2399
  %v2401 = vpop.f32.mrf.mxu0
  %v2402 = vadd.f32 %v2368, %v2401
  %2403 = vmatmul.bf16.gmra.mxu0 %v2134
  %v2404 = vpop.f32.mrf.mxu0
  %v2405 = vadd.f32 %v2371, %v2404
  %v2406 = vpop.f32.mrf.mxu0
  %v2407 = vadd.f32 %v2373, %v2406
  %2408 = vmatmul.bf16.gmra.mxu0 %v2137
  %v2409 = vpop.f32.mrf.mxu0
  %v2410 = vadd.f32 %v2376, %v2409
  %v2411 = vpop.f32.mrf.mxu0
  %v2412 = vadd.f32 %v2378, %v2411
  %2413 = vmatmul.bf16.gmra.mxu0 %v2140
  %v2414 = vpop.f32.mrf.mxu0
  %v2415 = vadd.f32 %v2381, %v2414
  %v2416 = vpop.f32.mrf.mxu0
  %v2417 = vadd.f32 %v2383, %v2416
  %2418 = vmatmul.bf16.gmra.mxu0 %v2143
  %v2419 = vpop.f32.mrf.mxu0
  %v2420 = vadd.f32 %v2386, %v2419
  %v2421 = vpop.f32.mrf.mxu0
  %v2422 = vadd.f32 %v2388, %v2421
  %2423 = vdwg.mxu0
  %v2424 = vtanh.pop %v2264
  %v2425 = vtanh.pop %v2400
  %v2426 = vtanh.pop %v2266
  %v2427 = vtanh.pop %v2402
  %v2428 = vtanh.pop %v2269
  %v2429 = vtanh.pop %v2405
  %v2430 = vtanh.pop %v2271
  %v2431 = vtanh.pop %v2407
  %v2432 = vtanh.pop %v2274
  %v2433 = vtanh.pop %v2410
  %v2434 = vtanh.pop %v2276
  %v2435 = vtanh.pop %v2412
  %v2436 = vtanh.pop %v2279
  %v2437 = vtanh.pop %v2415
  %v2438 = vtanh.pop %v2281
  %v2439 = vtanh.pop %v2417
  %v2440 = vtanh.pop %v2284
  %v2441 = vtanh.pop %v2420
  %v2442 = vtanh.pop %v2286
  %v2443 = vtanh.pop %v2422
  %v2444 = vadd.f32 %v2424, %v2426
  %v2445 = vadd.f32 %v2425, %v2427
  %v2446 = vadd.f32 %v2428, %v2430
  %v2447 = vadd.f32 %v2429, %v2431
  %v2448 = vadd.f32 %v2432, %v2434
  %v2449 = vadd.f32 %v2433, %v2435
  %v2450 = vadd.f32 %v2436, %v2438
  %v2451 = vadd.f32 %v2437, %v2439
  %v2452 = vadd.f32 %v2440, %v2442
  %v2453 = vadd.f32 %v2441, %v2443
  %v2454 = vmul.f32 %v2444, 0.5
  %v2455 = vmul.f32 %v2445, 0.5
  %v2456 = vmul.f32 %v2446, 0.5
  %v2457 = vmul.f32 %v2447, 0.5
  %v2458 = vmul.f32 %v2448, 0.5
  %v2459 = vmul.f32 %v2449, 0.5
  %v2460 = vmul.f32 %v2450, 0.5
  %v2461 = vmul.f32 %v2451, 0.5
  %v2462 = vmul.f32 %v2452, 0.5
  %v2463 = vmul.f32 %v2453, 0.5
  %v2464 = vpack.c.bf16 %v2456, %v2454
  %v2465 = vpack.c.bf16 %v2457, %v2455
  %v2466 = vpack.c.bf16 %v2460, %v2458
  %v2467 = vpack.c.bf16 %v2461, %v2459
  %v2468 = vpack.c.bf16 %v2462, %v2462
  %v2469 = vpack.c.bf16 %v2463, %v2463
  %v2470 = vld [vmem:[%s6] sm:$0xf]
  %v2471 = vld [vmem:[%s6 + $0x4] sm:$0xf]
  %v2472 = vld [vmem:[%s6 + $0x8] sm:$0xf]
  %v2473 = vld [vmem:[%s6 + $0xc] sm:$0xf]
  %v2474 = vld [vmem:[%s6 + $0x10] sm:$0xf]
  %v2475 = vld [vmem:[%s6 + $0x14] sm:$0xf]
  %v2476 = vld [vmem:[%s6 + $0x18] sm:$0xf]
  %v2477 = vld [vmem:[%s6 + $0x1c] sm:$0xf]
  %v2478 = vld [vmem:[%s6 + $0x20] sm:$0xf]
  %v2479 = vld [vmem:[%s6 + $0x24] sm:$0xf]
  %v2480 = vld [vmem:[%s6 + $0x28] sm:$0xf]
  %v2481 = vld [vmem:[%s6 + $0x2c] sm:$0xf]
  %v2482 = vld [vmem:[%s6 + $0x30] sm:$0xf]
  %v2483 = vld [vmem:[%s6 + $0x34] sm:$0xf]
  %v2484 = vld [vmem:[%s6 + $0x38] sm:$0xf]
  %v2485 = vld [vmem:[%s6 + $0x3c] sm:$0xf]
  %v2486 = vld [vmem:[%s6 + $0x40] sm:$0xf]
  %v2487 = vld [vmem:[%s6 + $0x44] sm:$0xf]
  %v2488 = vld [vmem:[%s6 + $0x48] sm:$0xf]
  %v2489 = vld [vmem:[%s6 + $0x4c] sm:$0xf]
  %v2510 = vunpack.c.l.b16 %v2470
  %v2511 = vunpack.c.l.b16 %v2471
  %v2512 = vunpack.c.l.b16 %v2472
  %v2513 = vunpack.c.l.b16 %v2473
  %v2514 = vunpack.c.l.b16 %v2474
  %v2515 = vunpack.c.l.b16 %v2475
  %v2516 = vunpack.c.l.b16 %v2476
  %v2517 = vunpack.c.l.b16 %v2477
  %v2518 = vunpack.c.l.b16 %v2478
  %v2519 = vunpack.c.l.b16 %v2479
  %v2520 = vunpack.c.l.b16 %v2480
  %v2521 = vunpack.c.l.b16 %v2481
  %v2522 = vunpack.c.l.b16 %v2482
  %v2523 = vunpack.c.l.b16 %v2483
  %v2524 = vunpack.c.l.b16 %v2484
  %v2525 = vunpack.c.l.b16 %v2485
  %v2526 = vunpack.c.l.b16 %v2486
  %v2527 = vunpack.c.l.b16 %v2487
  %v2528 = vunpack.c.l.b16 %v2488
  %v2529 = vunpack.c.l.b16 %v2489
  %v2530 = vpack.c.b16 %v2511, %v2510
  %v2531 = vpack.c.b16 %v2513, %v2512
  %v2532 = vpack.c.b16 %v2515, %v2514
  %v2533 = vpack.c.b16 %v2517, %v2516
  %v2534 = vpack.c.b16 %v2519, %v2518
  %v2535 = vpack.c.b16 %v2521, %v2520
  %v2536 = vpack.c.b16 %v2523, %v2522
  %v2537 = vpack.c.b16 %v2525, %v2524
  %v2538 = vpack.c.b16 %v2527, %v2526
  %v2539 = vpack.c.b16 %v2529, %v2528
  %v2551 = vsel %vm367, %v2465, 0
  %v2554 = vsel %vm367, %v2467, 0
  %v2557 = vsel %vm367, %v2469, 0
  %2559 = vmatpush.bf16.msra.mxu0 %v2537
  %2560 = vmatpush.bf16.msra.mxu0 %v2536
  %2561 = vmatpush.bf16.msra.mxu0 %v2535
  %2562 = vmatpush.bf16.msra.mxu0 %v2534
  %2563 = vmatpush.bf16.msra.mxu0 %v2533
  %2564 = vmatpush.bf16.msra.mxu0 %v2532
  %2565 = vmatpush.bf16.msra.mxu0 %v2531
  %2566 = vmatpush.bf16.msra.mxu0 %v2530
  %2567 = vmatmul.bf16.gmra.mxu0 %v2464
  %v2568 = vpop.f32.mrf.mxu0
  %v2569 = vadd.f32 0.0, %v2568
  %v2570 = vpop.f32.mrf.mxu0
  %v2571 = vadd.f32 0.0, %v2570
  %2572 = vmatmul.bf16.gmra.mxu0 %v2466
  %v2573 = vpop.f32.mrf.mxu0
  %v2574 = vadd.f32 0.0, %v2573
  %v2575 = vpop.f32.mrf.mxu0
  %v2576 = vadd.f32 0.0, %v2575
  %2577 = vmatmul.bf16.gmra.mxu0 %v2468
  %v2578 = vpop.f32.mrf.mxu0
  %v2579 = vadd.f32 0.0, %v2578
  %v2580 = vpop.f32.mrf.mxu0
  %2581 = vdwg.mxu0
  %2582 = vmatpush.bf16.msra.mxu0 0
  %2583 = vmatpush.bf16.msra.mxu0 0
  %2584 = vmatpush.bf16.msra.mxu0 0
  %2585 = vmatpush.bf16.msra.mxu0 0
  %2586 = vmatpush.bf16.msra.mxu0 0
  %2587 = vmatpush.bf16.msra.mxu0 0
  %2588 = vmatpush.bf16.msra.mxu0 %v2539
  %2589 = vmatpush.bf16.msra.mxu0 %v2538
  %2590 = vmatmul.bf16.gmra.mxu0 %v2551
  %v2591 = vpop.f32.mrf.mxu0
  %v2592 = vadd.f32 %v2569, %v2591
  %v2593 = vpop.f32.mrf.mxu0
  %v2594 = vadd.f32 %v2571, %v2593
  %2595 = vmatmul.bf16.gmra.mxu0 %v2554
  %v2596 = vpop.f32.mrf.mxu0
  %v2597 = vadd.f32 %v2574, %v2596
  %v2598 = vpop.f32.mrf.mxu0
  %v2599 = vadd.f32 %v2576, %v2598
  %2600 = vmatmul.bf16.gmra.mxu0 %v2557
  %v2601 = vpop.f32.mrf.mxu0
  %v2602 = vadd.f32 %v2579, %v2601
  %v2603 = vpop.f32.mrf.mxu0
  %2604 = vdwg.mxu0
  %v2605 = vpack.c.bf16 %v2592, %v2592
  %v2606 = vpack.c.bf16 %v2594, %v2594
  %v2607 = vpack.c.bf16 %v2597, %v2597
  %v2608 = vpack.c.bf16 %v2599, %v2599
  %v2609 = vpack.c.bf16 %v2602, %v2602
  %v2611 = vunpack.c.l.b16 %v2606
  %v2612 = vpack.c.b16 %v2611, %v2611
  %2613 = vrot.lane.b32.xlu0 %v2612, 80
  %v2614 = vpop.permute.xlu0 %2613
  %v2616 = vunpack.c.l.b16 %v2607
  %v2617 = vpack.c.b16 %v2616, %v2616
  %2618 = vrot.lane.b32.xlu0 %v2617, 32
  %v2619 = vpop.permute.xlu0 %2618
  %v2621 = vunpack.c.l.b16 %v2608
  %v2622 = vpack.c.b16 %v2621, %v2621
  %2623 = vrot.lane.b32.xlu0 %v2622, 112
  %v2624 = vpop.permute.xlu0 %2623
  %v2626 = vunpack.c.l.b16 %v2609
  %v2627 = vpack.c.b16 %v2626, %v2626
  %2628 = vrot.lane.b32.xlu0 %v2627, 64
  %v2629 = vpop.permute.xlu0 %2628
  %v2632 = vsel %vm1679, %v2605, %v2614
  %v2635 = vsel %vm367, %v2614, %v2619
  %vm2636 = vcmask 916480
  %v2638 = vsel %vm2636, %v2635, %v2624
  %v2641 = vsel %vm452, %v2624, %v2629
  %v2643 = vld [vmem:[%s7] sm:$0xf]
  %v2644 = vld [vmem:[%s7 + $0x4] sm:$0xf]
  %v2645 = vld [vmem:[%s7 + $0x8] sm:$0xf]
  %v2646 = vld [vmem:[%s7 + $0xc] sm:$0xf]
  %v2647 = vld [vmem:[%s7 + $0x10] sm:$0xf]
  %v2648 = vld [vmem:[%s7 + $0x14] sm:$0xf]
  %v2649 = vld [vmem:[%s7 + $0x18] sm:$0xf]
  %v2650 = vld [vmem:[%s7 + $0x1c] sm:$0xf]
  %v2651 = vld [vmem:[%s7 + $0x20] sm:$0xf]
  %v2652 = vld [vmem:[%s7 + $0x24] sm:$0xf]
  %v2653 = vld [vmem:[%s7 + $0x28] sm:$0xf]
  %v2654 = vld [vmem:[%s7 + $0x2c] sm:$0xf]
  %v2655 = vld [vmem:[%s7 + $0x30] sm:$0xf]
  %v2656 = vld [vmem:[%s7 + $0x34] sm:$0xf]
  %v2657 = vld [vmem:[%s7 + $0x38] sm:$0xf]
  %v2658 = vld [vmem:[%s7 + $0x3c] sm:$0xf]
  %v2659 = vld [vmem:[%s7 + $0x40] sm:$0xf]
  %v2660 = vld [vmem:[%s7 + $0x44] sm:$0xf]
  %v2661 = vld [vmem:[%s7 + $0x48] sm:$0xf]
  %v2662 = vld [vmem:[%s7 + $0x4c] sm:$0xf]
  %v2663 = vld [vmem:[%s7 + $0x50] sm:$0xf]
  %v2664 = vld [vmem:[%s7 + $0x54] sm:$0xf]
  %v2665 = vld [vmem:[%s7 + $0x58] sm:$0xf]
  %v2666 = vld [vmem:[%s7 + $0x5c] sm:$0xf]
  %v2667 = vld [vmem:[%s7 + $0x60] sm:$0xf]
  %v2668 = vld [vmem:[%s7 + $0x64] sm:$0xf]
  %v2669 = vld [vmem:[%s7 + $0x68] sm:$0xf]
  %v2670 = vld [vmem:[%s7 + $0x6c] sm:$0xf]
  %v2671 = vld [vmem:[%s7 + $0x70] sm:$0xf]
  %v2672 = vld [vmem:[%s7 + $0x74] sm:$0xf]
  %v2673 = vld [vmem:[%s7 + $0x78] sm:$0xf]
  %v2674 = vld [vmem:[%s7 + $0x7c] sm:$0xf]
  %v2675 = vld [vmem:[%s7 + $0x80] sm:$0xf]
  %v2676 = vld [vmem:[%s7 + $0x84] sm:$0xf]
  %v2677 = vld [vmem:[%s7 + $0x88] sm:$0xf]
  %v2678 = vld [vmem:[%s7 + $0x8c] sm:$0xf]
  %v2679 = vld [vmem:[%s7 + $0x90] sm:$0xf]
  %v2680 = vld [vmem:[%s7 + $0x94] sm:$0xf]
  %v2681 = vld [vmem:[%s7 + $0x98] sm:$0xf]
  %v2682 = vld [vmem:[%s7 + $0x9c] sm:$0xf]
  %v2683 = vld [vmem:[%s7 + $0xa0] sm:$0xf]
  %v2684 = vld [vmem:[%s7 + $0xa4] sm:$0xf]
  %v2685 = vld [vmem:[%s7 + $0xa8] sm:$0xf]
  %v2686 = vld [vmem:[%s7 + $0xac] sm:$0xf]
  %v2687 = vld [vmem:[%s7 + $0xb0] sm:$0xf]
  %v2688 = vld [vmem:[%s7 + $0xb4] sm:$0xf]
  %v2689 = vld [vmem:[%s7 + $0xb8] sm:$0xf]
  %v2690 = vld [vmem:[%s7 + $0xbc] sm:$0xf]
  %v2691 = vld [vmem:[%s7 + $0xc0] sm:$0xf]
  %v2692 = vld [vmem:[%s7 + $0xc4] sm:$0xf]
  %v2693 = vld [vmem:[%s8] sm:$0x1]
  %v2695 = vperm.slane %v2693, 0
  %v2747 = vunpack.c.l.b16 %v2643
  %v2748 = vunpack.c.l.b16 %v2644
  %v2749 = vunpack.c.l.b16 %v2645
  %v2750 = vunpack.c.l.b16 %v2646
  %v2751 = vunpack.c.l.b16 %v2647
  %v2752 = vunpack.c.l.b16 %v2648
  %v2753 = vunpack.c.l.b16 %v2649
  %v2754 = vunpack.c.l.b16 %v2650
  %v2755 = vunpack.c.l.b16 %v2651
  %v2756 = vunpack.c.l.b16 %v2652
  %v2757 = vunpack.c.l.b16 %v2653
  %v2758 = vunpack.c.l.b16 %v2654
  %v2759 = vunpack.c.l.b16 %v2655
  %v2760 = vunpack.c.l.b16 %v2656
  %v2761 = vunpack.c.l.b16 %v2657
  %v2762 = vunpack.c.l.b16 %v2658
  %v2763 = vunpack.c.l.b16 %v2659
  %v2764 = vunpack.c.l.b16 %v2660
  %v2765 = vunpack.c.l.b16 %v2661
  %v2766 = vunpack.c.l.b16 %v2662
  %v2767 = vunpack.c.l.b16 %v2663
  %v2768 = vunpack.c.l.b16 %v2664
  %v2769 = vunpack.c.l.b16 %v2665
  %v2770 = vunpack.c.l.b16 %v2666
  %v2771 = vunpack.c.l.b16 %v2667
  %v2772 = vunpack.c.l.b16 %v2668
  %v2773 = vunpack.c.l.b16 %v2669
  %v2774 = vunpack.c.l.b16 %v2670
  %v2775 = vunpack.c.l.b16 %v2671
  %v2776 = vunpack.c.l.b16 %v2672
  %v2777 = vunpack.c.l.b16 %v2673
  %v2778 = vunpack.c.l.b16 %v2674
  %v2779 = vunpack.c.l.b16 %v2675
  %v2780 = vunpack.c.l.b16 %v2676
  %v2781 = vunpack.c.l.b16 %v2677
  %v2782 = vunpack.c.l.b16 %v2678
  %v2783 = vunpack.c.l.b16 %v2679
  %v2784 = vunpack.c.l.b16 %v2680
  %v2785 = vunpack.c.l.b16 %v2681
  %v2786 = vunpack.c.l.b16 %v2682
  %v2787 = vunpack.c.l.b16 %v2683
  %v2788 = vunpack.c.l.b16 %v2684
  %v2789 = vunpack.c.l.b16 %v2685
  %v2790 = vunpack.c.l.b16 %v2686
  %v2791 = vunpack.c.l.b16 %v2687
  %v2792 = vunpack.c.l.b16 %v2688
  %v2793 = vunpack.c.l.b16 %v2689
  %v2794 = vunpack.c.l.b16 %v2690
  %v2795 = vunpack.c.l.b16 %v2691
  %v2796 = vunpack.c.l.b16 %v2692
  %v2797 = vpack.c.b16 %v2748, %v2747
  %v2798 = vpack.c.b16 %v2750, %v2749
  %v2799 = vpack.c.b16 %v2752, %v2751
  %v2800 = vpack.c.b16 %v2754, %v2753
  %v2801 = vpack.c.b16 %v2756, %v2755
  %v2802 = vpack.c.b16 %v2758, %v2757
  %v2803 = vpack.c.b16 %v2760, %v2759
  %v2804 = vpack.c.b16 %v2762, %v2761
  %v2805 = vpack.c.b16 %v2764, %v2763
  %v2806 = vpack.c.b16 %v2766, %v2765
  %v2807 = vpack.c.b16 %v2768, %v2767
  %v2808 = vpack.c.b16 %v2770, %v2769
  %v2809 = vpack.c.b16 %v2772, %v2771
  %v2810 = vpack.c.b16 %v2774, %v2773
  %v2811 = vpack.c.b16 %v2776, %v2775
  %v2812 = vpack.c.b16 %v2778, %v2777
  %v2813 = vpack.c.b16 %v2780, %v2779
  %v2814 = vpack.c.b16 %v2782, %v2781
  %v2815 = vpack.c.b16 %v2784, %v2783
  %v2816 = vpack.c.b16 %v2786, %v2785
  %v2817 = vpack.c.b16 %v2788, %v2787
  %v2818 = vpack.c.b16 %v2790, %v2789
  %v2819 = vpack.c.b16 %v2792, %v2791
  %v2820 = vpack.c.b16 %v2794, %v2793
  %v2821 = vpack.c.b16 %v2796, %v2795
  %vm2847 = vcmask 130048
  %v2848 = vsel %vm2847, %v2629, 0
  %2850 = vmatpush.bf16.msra.mxu0 %v2804
  %2851 = vmatpush.bf16.msra.mxu0 %v2803
  %2852 = vmatpush.bf16.msra.mxu0 %v2802
  %2853 = vmatpush.bf16.msra.mxu0 %v2801
  %2854 = vmatpush.bf16.msra.mxu0 %v2800
  %2855 = vmatpush.bf16.msra.mxu0 %v2799
  %2856 = vmatpush.bf16.msra.mxu0 %v2798
  %2857 = vmatpush.bf16.msra.mxu0 %v2797
  %2858 = vmatmul.bf16.gmra.mxu0 %v2632
  %v2859 = vpop.f32.mrf.mxu0
  %v2860 = vadd.f32 %v2695, %v2859
  %v2861 = vpop.f32.mrf.mxu0
  %2862 = vdwg.mxu0
  %2863 = vmatpush.bf16.msra.mxu0 %v2812
  %2864 = vmatpush.bf16.msra.mxu0 %v2811
  %2865 = vmatpush.bf16.msra.mxu0 %v2810
  %2866 = vmatpush.bf16.msra.mxu0 %v2809
  %2867 = vmatpush.bf16.msra.mxu0 %v2808
  %2868 = vmatpush.bf16.msra.mxu0 %v2807
  %2869 = vmatpush.bf16.msra.mxu0 %v2806
  %2870 = vmatpush.bf16.msra.mxu0 %v2805
  %2871 = vmatmul.bf16.gmra.mxu0 %v2638
  %v2872 = vpop.f32.mrf.mxu0
  %v2873 = vadd.f32 %v2860, %v2872
  %v2874 = vpop.f32.mrf.mxu0
  %2875 = vdwg.mxu0
  %2876 = vmatpush.bf16.msra.mxu0 %v2820
  %2877 = vmatpush.bf16.msra.mxu0 %v2819
  %2878 = vmatpush.bf16.msra.mxu0 %v2818
  %2879 = vmatpush.bf16.msra.mxu0 %v2817
  %2880 = vmatpush.bf16.msra.mxu0 %v2816
  %2881 = vmatpush.bf16.msra.mxu0 %v2815
  %2882 = vmatpush.bf16.msra.mxu0 %v2814
  %2883 = vmatpush.bf16.msra.mxu0 %v2813
  %2884 = vmatmul.bf16.gmra.mxu0 %v2641
  %v2885 = vpop.f32.mrf.mxu0
  %v2886 = vadd.f32 %v2873, %v2885
  %v2887 = vpop.f32.mrf.mxu0
  %2888 = vdwg.mxu0
  %2889 = vmatpush.bf16.msra.mxu0 0
  %2890 = vmatpush.bf16.msra.mxu0 0
  %2891 = vmatpush.bf16.msra.mxu0 0
  %2892 = vmatpush.bf16.msra.mxu0 0
  %2893 = vmatpush.bf16.msra.mxu0 0
  %2894 = vmatpush.bf16.msra.mxu0 0
  %2895 = vmatpush.bf16.msra.mxu0 0
  %2896 = vmatpush.bf16.msra.mxu0 %v2821
  %2897 = vmatmul.bf16.gmra.mxu0 %v2848
  %v2898 = vpop.f32.mrf.mxu0
  %v2899 = vadd.f32 %v2886, %v2898
  %v2900 = vpop.f32.mrf.mxu0
  %2901 = vdwg.mxu0
  %v2902 = vtanh.pop %v2899
  %v2903 = vpack.c.bf16 %v2902, %v2902
  %v2904 = vld [vmem:[%s9] sm:$0xf]
  %v2905 = vld [vmem:[%s9 + $0x4] sm:$0xf]
  %v2906 = vld [vmem:[%s9 + $0x8] sm:$0xf]
  %v2907 = vld [vmem:[%s9 + $0xc] sm:$0xf]
  %v2908 = vld [vmem:[%s9 + $0x10] sm:$0xf]
  %v2909 = vld [vmem:[%s9 + $0x14] sm:$0xf]
  %v2910 = vld [vmem:[%s9 + $0x18] sm:$0xf]
  %v2911 = vld [vmem:[%s9 + $0x1c] sm:$0xf]
  %v2912 = vld [vmem:[%s9 + $0x20] sm:$0xf]
  %v2913 = vld [vmem:[%s9 + $0x24] sm:$0xf]
  %v2914 = vld [vmem:[%s9 + $0x28] sm:$0xf]
  %v2915 = vld [vmem:[%s9 + $0x2c] sm:$0xf]
  %v2916 = vld [vmem:[%s9 + $0x30] sm:$0xf]
  %v2917 = vld [vmem:[%s9 + $0x34] sm:$0xf]
  %v2918 = vld [vmem:[%s9 + $0x38] sm:$0xf]
  %v2919 = vld [vmem:[%s10] sm:$0x1]
  %v2921 = vperm.slane %v2919, 0
  %v2938 = vunpack.c.l.b16 %v2904
  %v2939 = vunpack.c.l.b16 %v2905
  %v2940 = vunpack.c.l.b16 %v2906
  %v2941 = vunpack.c.l.b16 %v2907
  %v2942 = vunpack.c.l.b16 %v2908
  %v2943 = vunpack.c.l.b16 %v2909
  %v2944 = vunpack.c.l.b16 %v2910
  %v2945 = vunpack.c.l.b16 %v2911
  %v2946 = vunpack.c.l.b16 %v2912
  %v2947 = vunpack.c.l.b16 %v2913
  %v2948 = vunpack.c.l.b16 %v2914
  %v2949 = vunpack.c.l.b16 %v2915
  %v2950 = vunpack.c.l.b16 %v2916
  %v2951 = vunpack.c.l.b16 %v2917
  %v2952 = vunpack.c.l.b16 %v2918
  %v2953 = vpack.c.b16 %v2939, %v2938
  %v2954 = vpack.c.b16 %v2941, %v2940
  %v2955 = vpack.c.b16 %v2943, %v2942
  %v2956 = vpack.c.b16 %v2945, %v2944
  %v2957 = vpack.c.b16 %v2947, %v2946
  %v2958 = vpack.c.b16 %v2949, %v2948
  %v2959 = vpack.c.b16 %v2951, %v2950
  %v2960 = vpack.c.b16 %v2952, %v2952
  %vm2968 = vcmask 982016
  %v2970 = vsel %vm2968, %v2903, 0
  %v2973 = vsel %vm1382, %v2960, 0
  %2975 = vmatpush.bf16.msra.mxu0 %v2973
  %2976 = vmatpush.bf16.msra.mxu0 %v2959
  %2977 = vmatpush.bf16.msra.mxu0 %v2958
  %2978 = vmatpush.bf16.msra.mxu0 %v2957
  %2979 = vmatpush.bf16.msra.mxu0 %v2956
  %2980 = vmatpush.bf16.msra.mxu0 %v2955
  %2981 = vmatpush.bf16.msra.mxu0 %v2954
  %2982 = vmatpush.bf16.msra.mxu0 %v2953
  %2983 = vmatmul.bf16.gmra.mxu0 %v2970
  %v2984 = vpop.f32.mrf.mxu0
  %v2985 = vadd.f32 %v2921, %v2984
  %v2986 = vpop.f32.mrf.mxu0
  %2987 = vdwg.mxu0
  %v2988 = vtanh.pop %v2985
  %v2989 = vpack.c.bf16 %v2988, %v2988
  %v2990 = vld [vmem:[%s11] sm:$0xf]
  %v2991 = vld [vmem:[%s11 + $0x4] sm:$0xf]
  %v2992 = vld [vmem:[%s11 + $0x8] sm:$0xf]
  %v2993 = vld [vmem:[%s11 + $0xc] sm:$0xf]
  %v2994 = vld [vmem:[%s11 + $0x10] sm:$0xf]
  %v2995 = vld [vmem:[%s11 + $0x14] sm:$0xf]
  %v2996 = vld [vmem:[%s11 + $0x18] sm:$0xf]
  %v2997 = vld [vmem:[%s11 + $0x1c] sm:$0xf]
  %v2998 = vld [vmem:[%s11 + $0x20] sm:$0xf]
  %v2999 = vld [vmem:[%s11 + $0x24] sm:$0xf]
  %v3000 = vld [vmem:[%s11 + $0x28] sm:$0x3]
  %v3001 = vld [vmem:[%s12] sm:$0x1]
  %v3003 = vperm.slane %v3001, 0
  %v3016 = vunpack.c.l.b16 %v2990
  %v3017 = vunpack.c.l.b16 %v2991
  %v3018 = vunpack.c.l.b16 %v2992
  %v3019 = vunpack.c.l.b16 %v2993
  %v3020 = vunpack.c.l.b16 %v2994
  %v3021 = vunpack.c.l.b16 %v2995
  %v3022 = vunpack.c.l.b16 %v2996
  %v3023 = vunpack.c.l.b16 %v2997
  %v3024 = vunpack.c.l.b16 %v2998
  %v3025 = vunpack.c.l.b16 %v2999
  %v3026 = vunpack.c.l.b16 %v3000
  %v3027 = vpack.c.b16 %v3017, %v3016
  %v3028 = vpack.c.b16 %v3019, %v3018
  %v3029 = vpack.c.b16 %v3021, %v3020
  %v3030 = vpack.c.b16 %v3023, %v3022
  %v3031 = vpack.c.b16 %v3025, %v3024
  %v3032 = vpack.c.b16 %v3026, %v3026
  %v3039 = vsel %vm1607, %v2989, 0
  %v3042 = vsel %vm2145, %v3032, 0
  %3044 = vmatpush.bf16.msra.mxu0 0
  %3045 = vmatpush.bf16.msra.mxu0 0
  %3046 = vmatpush.bf16.msra.mxu0 %v3042
  %3047 = vmatpush.bf16.msra.mxu0 %v3031
  %3048 = vmatpush.bf16.msra.mxu0 %v3030
  %3049 = vmatpush.bf16.msra.mxu0 %v3029
  %3050 = vmatpush.bf16.msra.mxu0 %v3028
  %3051 = vmatpush.bf16.msra.mxu0 %v3027
  %3052 = vmatmul.bf16.gmra.mxu0 %v3039
  %v3053 = vpop.f32.mrf.mxu0
  %v3054 = vadd.f32 %v3003, %v3053
  %v3055 = vpop.f32.mrf.mxu0
  %3056 = vdwg.mxu0
  %3057 = vmax.xlane.f32.xlu0 %v3054
  %v3058 = vpop.xlane.xlu0 %3057
  %v3059 = vsub.f32 %v3054, %v3058
  %v3060 = vmul.f32 %v3059, 1.442695
  %v3061 = vpow.pop %v3060
  %3062 = vadd.xlane.f32.xlu0 %v3061
  %v3063 = vpop.xlane.xlu0 %3062
  %v3064 = vrcp.pop %v3063
  %v3065 = vmul.f32 %v3063, %v3064
  %v3066 = vsub.f32 1.0, %v3065
  %v3067 = vmul.f32 %v3064, %v3066
  %v3068 = vadd.f32 %v3064, %v3067
  %vm3069 = vweird.f32 %v3063
  %vm3070 = vweird.f32 %v3064
  %vm3071 = vmor %vm3069, %vm3070
  %v3072 = vsel %vm3071, %v3064, %v3068
  %v3073 = vand.u32 2147483647, %v3063
  %vm3074 = vcmp.eq.f32.partialorder %v3073, 8.507059e+37
  %v3075 = vand.u32 %v3063, 2147483648
  %v3076 = vor.u32 1.1754944e-38, %v3075
  %v3077 = vsel %vm3074, %v3076, %v3072
  %v3078 = vmul.f32 %v3061, %v3077
  %3079 = vst [vmem:[%s13] sm:$0xff] %v3078
  // Predicated region
  $region54: #{lenet5_forward.1} parent=0 // pred_check
    _
  $region55: #{lenet5_forward.1} parent=0 // pred_check_branch
    %3081 = sbr.rel (0) target = $region57
  $region56: #{lenet5_forward.1} parent=0 // pred_region
    _
  $region57: #{lenet5_forward.1} parent=0 // pred_fallthru
    _
  // Predicated region
  $region58: #{lenet5_forward.1} parent=0 // pred_check
    _
  $region59: #{lenet5_forward.1} parent=0 // pred_check_branch
    %3083 = sbr.rel (0) target = $region61
  $region60: #{lenet5_forward.1} parent=0 // pred_region
    _
  $region61: #{lenet5_forward.1} parent=0 // pred_fallthru
    _

</llo_original>
